<compile_context>
chip_gen: v7x
topology: tpu7x:2x2x1
jax: 0.10.0
libtpu: 0.0.40
codegen_flags: <defaults>
</compile_context>

<pallas_src>
import math

import jax
import jax.numpy as jnp
from jax import lax
from jax.experimental import pallas as pl
from jax.experimental.pallas import tpu as pltpu

_CONV_OFF = 8  # sublane-aligned offset of the current chunk inside the conv window


def _silu(x):
    return x * (1.0 / (1.0 + jnp.exp(-x)))


def _softplus(x):
    # matches torch.nn.functional.softplus (threshold=20)
    return jnp.where(x > 20.0, x, jnp.log1p(jnp.exp(x)))


def mamba_kernel(x_ref, w_in_ref, conv_w_ref, conv_b_ref, w_xf_ref, w_dt_ref,
                 dt_b_ref, negA_ref, d_ref, w_out_ref, o_ref,
                 conv_scr, h_scr, delta_scr, dx_scr, bm_scr, cm_scr):
    TL = x_ref.shape[1]                       # sequence-chunk length
    d_state, d_inner = negA_ref.shape
    d_conv = conv_w_ref.shape[0]
    seg = w_dt_ref.shape[0]                   # lane-padded segment width of x_proj
    halo = d_conv - 1
    off = conv_scr.shape[0] - TL              # == _CONV_OFF
    cdt = w_in_ref.dtype                      # matmul compute dtype (f32 or bf16)

    c = pl.program_id(1)

    # Reset carried state (SSM state h, conv halo rows) at the start of each sequence.
    # Grid iterates the last axis innermost, so chunks run sequentially per batch; the
    # chunk axis MUST stay "arbitrary" (sequential) because h_scr / conv_scr carry state.
    @pl.when(c == 0)
    def _():
        h_scr[...] = jnp.zeros_like(h_scr)
        conv_scr[0:off, :] = jnp.zeros((off, d_inner), jnp.float32)

    x = x_ref[0]                                                    # (TL, d_model)

    # ---- fused in_proj -> [x | z] ----------------------------------------------
    xz = jnp.dot(x.astype(cdt), w_in_ref[...],
                 preferred_element_type=jnp.float32)                # (TL, 2*d_inner)
    xin = xz[:, :d_inner]                                           # (TL, d_inner)
    z = xz[:, d_inner:]                                             # (TL, d_inner)

    # ---- depthwise causal conv over the sequence (halo carried in conv_scr) -----
    # Single aligned window load; taps are derived from the loaded value (shifts are
    # precomputed once, off the VALU chain) rather than 4 misaligned ref-slice loads.
    conv_scr[off:off + TL, :] = xin
    w = conv_scr[...]                                               # (off+TL, d_inner)
    # stash the tail of this chunk's xin for the next chunk's halo
    if TL >= off:
        conv_scr[0:off, :] = xin[TL - off:TL, :]                    # aligned 8-row store
    else:
        conv_scr[off - halo:off, :] = xin[TL - halo:TL, :]
    acc = w[off - halo:off - halo + TL, :] * conv_w_ref[0:1, :]
    for k in range(1, d_conv):
        acc = acc + w[off - halo + k:off - halo + k + TL, :] * conv_w_ref[k:k + 1, :]
    xc = _silu(acc + conv_b_ref[...])                               # (TL, d_inner) f32

    # ---- fused x_proj -> [dt | B | C], segments padded to `seg` lanes -----------
    xall = jnp.dot(xc.astype(cdt), w_xf_ref[...],
                   preferred_element_type=jnp.float32)              # (TL, 3*seg)
    # dt_proj in f32 (w_dt_ref is f32): delta feeds exp() iterated over the sequence.
    delta = _softplus(
        jnp.dot(xall[:, :seg], w_dt_ref[...],
                preferred_element_type=jnp.float32) + dt_b_ref[...])  # (TL, d_inner)
    delta_scr[...] = delta
    dx_scr[...] = delta * xc                                        # precomputed delta*x
    # lane-dense (unmasked) stores of the full padded segments; only [:d_state] is used
    bm_scr[...] = xall[:, seg:2 * seg]                              # (TL, seg)
    cm_scr[...] = xall[:, 2 * seg:3 * seg]                          # (TL, seg)

    # ---- selective scan ----------------------------------------------------------
    # Column-tiled over d_inner: per column tile the whole time loop runs with the
    # (d_state, CT) state h carried in the fori_loop carry (no per-step h_scr traffic).
    # Within a macro-step of `mac` time steps, exp(delta*A) and B (x) (delta*x) are
    # computed for all `mac` steps before the carried recurrence, so the serial chain
    # per step is just h = dA*h + bx plus the C.h sublane reduction.
    if TL % 8 == 0:
        mac = 8
    elif TL % 4 == 0:
        mac = 4
    elif TL % 2 == 0:
        mac = 2
    else:
        mac = 1
    n_mac = TL // mac

    if d_inner % 512 == 0:
        CT = 512
    elif d_inner % 256 == 0:
        CT = 256
    elif d_inner % 128 == 0:
        CT = 128
    else:
        CT = d_inner
    n_col = d_inner // CT

    for col in range(n_col):
        c0 = col * CT
        A_tile = negA_ref[:, c0:c0 + CT]                            # (d_state, CT)

        def macro_step(i, h, c0=c0, A_tile=A_tile):
            base = pl.multiple_of(i * mac, mac)
            d_blk = delta_scr[pl.ds(base, mac), c0:c0 + CT]         # (mac, CT)
            dx_blk = dx_scr[pl.ds(base, mac), c0:c0 + CT]           # (mac, CT)
            bT = bm_scr[pl.ds(base, mac), :d_state].T               # (d_state, mac)
            cT = cm_scr[pl.ds(base, mac), :d_state].T               # (d_state, mac)
            # hoisted off the serial dependency chain (EUP / broadcast work)
            dAs = [jnp.exp(d_blk[j:j + 1, :] * A_tile) for j in range(mac)]
            bxs = [bT[:, j:j + 1] * dx_blk[j:j + 1, :] for j in range(mac)]
            rows = []
            for j in range(mac):
                h = dAs[j] * h + bxs[j]                             # (d_state, CT)
                rows.append(jnp.sum(h * cT[:, j:j + 1], axis=0, keepdims=True))
            # scan output reuses dx_scr (delta*x already consumed for these rows/cols)
            dx_scr[pl.ds(base, mac), c0:c0 + CT] = jnp.concatenate(rows, axis=0)
            return h

        h_fin = lax.fori_loop(0, n_mac, macro_step, h_scr[:, c0:c0 + CT])
        h_scr[:, c0:c0 + CT] = h_fin                                # carry to next chunk

    # ---- skip term, gate with silu(z), out_proj ---------------------------------
    y = dx_scr[...] + d_ref[...] * xc                               # (TL, d_inner)
    y = y * _silu(z)
    o_ref[0] = jnp.dot(y.astype(cdt), w_out_ref[...],
                       preferred_element_type=jnp.float32).astype(o_ref.dtype)


def _prepare_params(params, compute_dtype):
    """Host-side weight prep: fuse in_proj, pad+fuse x_proj, pre-negate/transpose A."""
    (w_in_x, w_in_z, conv_w, conv_b, w_xdt, w_xB, w_xC, w_dt, dt_b,
     A_log, Dp, w_out) = params
    d_model, d_inner = w_in_x.shape
    dt_rank = w_xdt.shape[1]
    d_state = A_log.shape[1]
    cdt = compute_dtype

    w_in = jnp.concatenate([w_in_x, w_in_z], axis=1).astype(cdt)    # (d_model, 2*d_inner)

    seg = 128 * max(1, -(-dt_rank // 128), -(-d_state // 128))
    w_xf = jnp.zeros((d_inner, 3 * seg), jnp.float32)
    w_xf = w_xf.at[:, :dt_rank].set(w_xdt)
    w_xf = w_xf.at[:, seg:seg + d_state].set(w_xB)
    w_xf = w_xf.at[:, 2 * seg:2 * seg + d_state].set(w_xC)
    w_xf = w_xf.astype(cdt)                                         # (d_inner, 3*seg)

    # dt_proj weights stay f32 regardless of compute dtype (accuracy in the scan).
    w_dt_pad = jnp.zeros((seg, d_inner), jnp.float32).at[:dt_rank, :].set(w_dt)

    negA_T = (-jnp.exp(A_log)).T.astype(jnp.float32)                # (d_state, d_inner)
    d_row = Dp.reshape(1, d_inner).astype(jnp.float32)              # (1, d_inner)

    return (w_in, conv_w.astype(jnp.float32), conv_b.astype(jnp.float32),
            w_xf, w_dt_pad, dt_b.astype(jnp.float32), negA_T, d_row,
            w_out.astype(cdt))


def mamba_forward(x, params, *, chunk=None, compute_dtype=jnp.float32):
    Bsz, L, d_model = x.shape
    kparams = _prepare_params(params, compute_dtype)
    (w_in, conv_w, conv_b, w_xf, w_dt_pad, dt_b, negA_T, d_row, w_out) = kparams
    d_state, d_inner = negA_T.shape
    d_conv = conv_w.shape[0]
    seg = w_dt_pad.shape[0]
    halo = d_conv - 1
    assert halo <= _CONV_OFF

    if chunk is None:
        # v5e/v6e: 256 amortizes grid overhead and matches the 256-deep MXU on v6e.
        # TODO(synk): on v7x (64 MiB VMEM) prefer chunk=128 and bf16 weights for large d_inner.
        if L % 256 == 0:
            chunk = 256
        elif L % 128 == 0:
            chunk = 128
        else:
            chunk = L
    if L % chunk != 0 or chunk < halo:
        raise ValueError("sequence length must be divisible by the chunk size "
                         "and the chunk must cover the conv halo")
    n_chunks = L // chunk

    # Grid-invariant resident weights: single-buffered (constant index_map, so
    # double-buffering would only double their VMEM footprint).
    def wspec(arr):
        return pl.BlockSpec(arr.shape, lambda b, c: (0, 0),
                            pipeline_mode=pl.Buffered(1))

    in_specs = [pl.BlockSpec((1, chunk, d_model), lambda b, c: (b, c, 0))]
    in_specs += [wspec(p) for p in kparams]

    scratch = [
        pltpu.VMEM((_CONV_OFF + chunk, d_inner), jnp.float32),      # conv window (halo carried)
        pltpu.VMEM((d_state, d_inner), jnp.float32),                # SSM state h (carried)
        pltpu.VMEM((chunk, d_inner), jnp.float32),                  # delta
        pltpu.VMEM((chunk, d_inner), jnp.float32),                  # delta*x, reused as scan y
        pltpu.VMEM((chunk, seg), jnp.float32),                      # B (lane-dense padded)
        pltpu.VMEM((chunk, seg), jnp.float32),                      # C (lane-dense padded)
    ]

    # Explicit VMEM budget: resident weights + scratch + double-buffered I/O blocks (+25%).
    itemsize = jnp.dtype(compute_dtype).itemsize
    weight_bytes = sum(int(p.size) * p.dtype.itemsize for p in kparams)
    scratch_bytes = 4 * ((_CONV_OFF + chunk) * d_inner + d_state * d_inner
                         + 2 * chunk * d_inner + 2 * chunk * seg)
    io_bytes = 2 * chunk * d_model * (itemsize + 4)
    needed = weight_bytes + scratch_bytes + io_bytes
    vmem_limit = int(min(max(needed * 5 // 4 + (1 << 20), 8 << 20), 128 << 20))

    # Advisory cost estimate for XLA's scheduler around the fused kernel.
    flops = 2 * Bsz * L * (d_model * 2 * d_inner + d_inner * 3 * seg
                           + seg * d_inner + d_inner * d_model)
    flops += Bsz * L * d_inner * (6 * d_state + 2 * d_conv + 8)
    transcendentals = Bsz * L * d_inner * (d_state + 4)
    bytes_accessed = int(x.size) * itemsize + Bsz * L * d_model * 4 + weight_bytes
    ce = pl.CostEstimate(flops=flops, transcendentals=transcendentals,
                         bytes_accessed=bytes_accessed)

    return pl.pallas_call(
        mamba_kernel,
        out_shape=jax.ShapeDtypeStruct((Bsz, L, d_model), jnp.float32),
        grid=(Bsz, n_chunks),
        in_specs=in_specs,
        out_specs=pl.BlockSpec((1, chunk, d_model), lambda b, c: (b, c, 0)),
        scratch_shapes=scratch,
        compiler_params=pltpu.CompilerParams(
            dimension_semantics=("parallel", "arbitrary"),
            vmem_limit_bytes=vmem_limit),
        cost_estimate=ce,
    )(x.astype(compute_dtype), *kparams)


def mamba_reference(x, params):
    """Pure-JAX reference with identical semantics (mamba_ssm slow path)."""
    (w_in_x, w_in_z, conv_w, conv_b, w_xdt, w_xB, w_xC, w_dt, dt_b,
     A_log, Dp, w_out) = params
    Bsz, L, _ = x.shape
    d_conv, d_inner = conv_w.shape
    A = -jnp.exp(A_log)
    outs = []
    for b in range(Bsz):
        xb = x[b]
        xin = xb @ w_in_x
        z = xb @ w_in_z
        xp = jnp.concatenate([jnp.zeros((d_conv - 1, d_inner)), xin], axis=0)
        conv = conv_b[0][None, :]
        for k in range(d_conv):
            conv = conv + xp[k:k + L, :] * conv_w[k][None, :]
        xc = _silu(conv)
        dt_low = xc @ w_xdt
        Bm = xc @ w_xB
        Cm = xc @ w_xC
        delta = _softplus(dt_low @ w_dt + dt_b[0][None, :])
        h = jnp.zeros((d_inner, A.shape[1]))
        ys = []
        for t in range(L):
            dA = jnp.exp(delta[t][:, None] * A)
            h = dA * h + delta[t][:, None] * Bm[t][None, :] * xc[t][:, None]
            ys.append((h * Cm[t][None, :]).sum(-1) + Dp[:, 0] * xc[t])
        y = jnp.stack(ys, axis=0) * _silu(z)
        outs.append(y @ w_out)
    return jnp.stack(outs, axis=0)


def make_params(key, d_model, d_state=16, d_conv=4, expand=2):
    d_inner = expand * d_model
    dt_rank = math.ceil(d_model / 16)
    ks = jax.random.split(key, 10)
    f32 = jnp.float32

    w_in_x = jax.random.normal(ks[0], (d_model, d_inner), f32) / math.sqrt(d_model)
    w_in_z = jax.random.normal(ks[1], (d_model, d_inner), f32) / math.sqrt(d_model)
    conv_w = jax.random.normal(ks[2], (d_conv, d_inner), f32) / math.sqrt(d_conv)
    conv_b = 0.1 * jax.random.normal(ks[3], (1, d_inner), f32)
    w_xdt = jax.random.normal(ks[4], (d_inner, dt_rank), f32) / math.sqrt(d_inner)
    w_xB = jax.random.normal(ks[5], (d_inner, d_state), f32) / math.sqrt(d_inner)
    w_xC = jax.random.normal(ks[6], (d_inner, d_state), f32) / math.sqrt(d_inner)
    w_dt = jax.random.normal(ks[7], (dt_rank, d_inner), f32) / math.sqrt(dt_rank)
    # mamba-style dt bias init: inverse-softplus of dt in [1e-3, 0.1]
    u = jax.random.uniform(ks[8], (1, d_inner), f32)
    dt = jnp.exp(u * (math.log(0.1) - math.log(1e-3)) + math.log(1e-3))
    dt_b = jnp.log(jnp.expm1(dt))
    # mamba-style A init: A = arange(1, d_state+1) per channel
    A_log = jnp.log(jnp.broadcast_to(
        jnp.arange(1, d_state + 1, dtype=f32)[None, :], (d_inner, d_state)))
    Dp = jnp.ones((d_inner, 1), f32)
    w_out = jax.random.normal(ks[9], (d_inner, d_model), f32) / math.sqrt(d_inner)

    return (w_in_x, w_in_z, conv_w, conv_b, w_xdt, w_xB, w_xC, w_dt, dt_b,
            A_log, Dp, w_out)


if __name__ == "__main__":
    B, L, d_model = 2, 8, 32   # small shapes; d_inner=64, d_state=16, d_conv=4, dt_rank=2
    key = jax.random.PRNGKey(0)
    kp, kx = jax.random.split(key)
    params = make_params(kp, d_model)
    x = jax.random.normal(kx, (B, L, d_model), jnp.float32)

    # f32 path: must match the pure-JAX reference tightly
    out = jax.block_until_ready(mamba_forward(x, params))
    ref = mamba_reference(x, params)
    assert out.shape == (B, L, d_model)
    max_err = float(jnp.max(jnp.abs(out - ref)))
    assert max_err < 1e-3, f"kernel/reference mismatch: {max_err}"

    # bf16 matmul path (f32 accumulation, f32 dt_proj + scan): loose sanity check only
    out_bf16 = jax.block_until_ready(
        mamba_forward(x, params, compute_dtype=jnp.bfloat16))
    assert out_bf16.shape == (B, L, d_model)
    assert bool(jnp.all(jnp.isfinite(out_bf16)))
    assert float(jnp.max(jnp.abs(out_bf16 - ref))) < 0.5

    print("KERNEL_OK")
</pallas_src>

<mosaic_0001>
module attributes {stable_mosaic.version = 11 : i64} {
  func.func @mamba_kernel(%arg0: i32, %arg1: i32, %arg2: memref<1x8x32xf32, #tpu.memory_space<vmem>>, %arg3: memref<32x128xf32, #tpu.memory_space<vmem>>, %arg4: memref<4x64xf32, #tpu.memory_space<vmem>>, %arg5: memref<1x64xf32, #tpu.memory_space<vmem>>, %arg6: memref<64x384xf32, #tpu.memory_space<vmem>>, %arg7: memref<128x64xf32, #tpu.memory_space<vmem>>, %arg8: memref<1x64xf32, #tpu.memory_space<vmem>>, %arg9: memref<16x64xf32, #tpu.memory_space<vmem>>, %arg10: memref<1x64xf32, #tpu.memory_space<vmem>>, %arg11: memref<64x32xf32, #tpu.memory_space<vmem>>, %arg12: memref<1x8x32xf32, #tpu.memory_space<vmem>>, %arg13: memref<16x64xf32, #tpu.memory_space<vmem>>, %arg14: memref<16x64xf32, #tpu.memory_space<vmem>>, %arg15: memref<8x64xf32, #tpu.memory_space<vmem>>, %arg16: memref<8x64xf32, #tpu.memory_space<vmem>>, %arg17: memref<8x128xf32, #tpu.memory_space<vmem>>, %arg18: memref<8x128xf32, #tpu.memory_space<vmem>>) attributes {dimension_semantics = [#tpu.dimension_semantics<parallel>, #tpu.dimension_semantics<arbitrary>], iteration_bounds = array<i64: 2, 1>, scalar_prefetch = 0 : i64, scratch_operands = 6 : i64, tpu.core_type = #tpu.core_type<tc>, window_params = [{transform_indices = @transform_0, window_bounds = array<i64: 1, 8, 32>}, {pipeline_mode = #tpu.pipeline_mode<synchronous>, transform_indices = @transform_1, window_bounds = array<i64: 32, 128>}, {pipeline_mode = #tpu.pipeline_mode<synchronous>, transform_indices = @transform_2, window_bounds = array<i64: 4, 64>}, {pipeline_mode = #tpu.pipeline_mode<synchronous>, transform_indices = @transform_3, window_bounds = array<i64: 1, 64>}, {pipeline_mode = #tpu.pipeline_mode<synchronous>, transform_indices = @transform_4, window_bounds = array<i64: 64, 384>}, {pipeline_mode = #tpu.pipeline_mode<synchronous>, transform_indices = @transform_5, window_bounds = array<i64: 128, 64>}, {pipeline_mode = #tpu.pipeline_mode<synchronous>, transform_indices = @transform_6, window_bounds = array<i64: 1, 64>}, {pipeline_mode = #tpu.pipeline_mode<synchronous>, transform_indices = @transform_7, window_bounds = array<i64: 16, 64>}, {pipeline_mode = #tpu.pipeline_mode<synchronous>, transform_indices = @transform_8, window_bounds = array<i64: 1, 64>}, {pipeline_mode = #tpu.pipeline_mode<synchronous>, transform_indices = @transform_9, window_bounds = array<i64: 64, 32>}, {transform_indices = @transform_10, window_bounds = array<i64: 1, 8, 32>}]} {
    %c0_i32 = arith.constant 0 : i32
    %0 = arith.cmpi eq, %arg1, %c0_i32 : i32
    %1 = arith.extui %0 : i1 to i32
    %c0_i32_0 = arith.constant 0 : i32
    %2 = arith.cmpi ne, %1, %c0_i32_0 : i32
    scf.if %2 {
      %cst_70 = arith.constant 0.000000e+00 : f32
      %227 = vector.broadcast %cst_70 : f32 to vector<16x64xf32>
      %c0_71 = arith.constant 0 : index
      %c0_72 = arith.constant 0 : index
      %228 = vector.load %arg14[%c0_71, %c0_72] : memref<16x64xf32, #tpu.memory_space<vmem>>, vector<16x64xf32>
      tpu.vector_store %arg14[%c0_71, %c0_72], %227 {strides = array<i32>} : memref<16x64xf32, #tpu.memory_space<vmem>>, vector<16x64xf32>,
      %cst_73 = arith.constant 0.000000e+00 : f32
      %229 = vector.broadcast %cst_73 : f32 to vector<8x64xf32>
      %c0_74 = arith.constant 0 : index
      %c0_75 = arith.constant 0 : index
      %230 = vector.load %arg13[%c0_74, %c0_75] : memref<16x64xf32, #tpu.memory_space<vmem>>, vector<8x64xf32>
      tpu.vector_store %arg13[%c0_74, %c0_75], %229 {strides = array<i32>} : memref<16x64xf32, #tpu.memory_space<vmem>>, vector<8x64xf32>,
    } else {
    }
    %c0 = arith.constant 0 : index
    %c0_1 = arith.constant 0 : index
    %c0_2 = arith.constant 0 : index
    %3 = vector.load %arg2[%c0, %c0_1, %c0_2] : memref<1x8x32xf32, #tpu.memory_space<vmem>>, vector<1x8x32xf32>
    %4 = vector.shape_cast %3 : vector<1x8x32xf32> to vector<8x32xf32>
    %c0_3 = arith.constant 0 : index
    %c0_4 = arith.constant 0 : index
    %5 = vector.load %arg3[%c0_3, %c0_4] : memref<32x128xf32, #tpu.memory_space<vmem>>, vector<32x128xf32>
    %cst = arith.constant dense<0.000000e+00> : vector<8x128xf32>
    %6 = tpu.matmul %4, %5, %cst {dimension_numbers = #tpu.dot_dimension_numbers<[1], [0], [0], [1], [0, 0, 1, 1], [], []>} : vector<8x32xf32>, vector<32x128xf32>, vector<8x128xf32> -> vector<8x128xf32>
    %7 = vector.extract_strided_slice %6 {offsets = [0, 0], sizes = [8, 64], strides = [1, 1]} : vector<8x128xf32> to vector<8x64xf32>
    %8 = vector.extract_strided_slice %6 {offsets = [0, 64], sizes = [8, 64], strides = [1, 1]} : vector<8x128xf32> to vector<8x64xf32>
    %c8 = arith.constant 8 : index
    %c0_5 = arith.constant 0 : index
    %9 = vector.load %arg13[%c8, %c0_5] : memref<16x64xf32, #tpu.memory_space<vmem>>, vector<8x64xf32>
    tpu.vector_store %arg13[%c8, %c0_5], %7 {strides = array<i32>} : memref<16x64xf32, #tpu.memory_space<vmem>>, vector<8x64xf32>,
    %c0_6 = arith.constant 0 : index
    %c0_7 = arith.constant 0 : index
    %10 = vector.load %arg13[%c0_6, %c0_7] : memref<16x64xf32, #tpu.memory_space<vmem>>, vector<16x64xf32>
    %c0_8 = arith.constant 0 : index
    %c0_9 = arith.constant 0 : index
    %11 = vector.load %arg13[%c0_8, %c0_9] : memref<16x64xf32, #tpu.memory_space<vmem>>, vector<8x64xf32>
    tpu.vector_store %arg13[%c0_8, %c0_9], %7 {strides = array<i32>} : memref<16x64xf32, #tpu.memory_space<vmem>>, vector<8x64xf32>,
    %12 = vector.extract_strided_slice %10 {offsets = [5, 0], sizes = [8, 64], strides = [1, 1]} : vector<16x64xf32> to vector<8x64xf32>
    %c0_10 = arith.constant 0 : index
    %c0_11 = arith.constant 0 : index
    %13 = vector.load %arg4[%c0_10, %c0_11] : memref<4x64xf32, #tpu.memory_space<vmem>>, vector<1x64xf32>
    %14 = vector.broadcast %13 : vector<1x64xf32> to vector<8x64xf32>
    %15 = arith.mulf %12, %14 : vector<8x64xf32>
    %16 = vector.extract_strided_slice %10 {offsets = [6, 0], sizes = [8, 64], strides = [1, 1]} : vector<16x64xf32> to vector<8x64xf32>
    %c1 = arith.constant 1 : index
    %c0_12 = arith.constant 0 : index
    %17 = vector.load %arg4[%c1, %c0_12] : memref<4x64xf32, #tpu.memory_space<vmem>>, vector<1x64xf32>
    %18 = vector.broadcast %17 : vector<1x64xf32> to vector<8x64xf32>
    %19 = arith.mulf %16, %18 : vector<8x64xf32>
    %20 = arith.addf %15, %19 : vector<8x64xf32>
    %21 = vector.extract_strided_slice %10 {offsets = [7, 0], sizes = [8, 64], strides = [1, 1]} : vector<16x64xf32> to vector<8x64xf32>
    %c2 = arith.constant 2 : index
    %c0_13 = arith.constant 0 : index
    %22 = vector.load %arg4[%c2, %c0_13] : memref<4x64xf32, #tpu.memory_space<vmem>>, vector<1x64xf32>
    %23 = vector.broadcast %22 : vector<1x64xf32> to vector<8x64xf32>
    %24 = arith.mulf %21, %23 : vector<8x64xf32>
    %25 = arith.addf %20, %24 : vector<8x64xf32>
    %26 = vector.extract_strided_slice %10 {offsets = [8, 0], sizes = [8, 64], strides = [1, 1]} : vector<16x64xf32> to vector<8x64xf32>
    %c3 = arith.constant 3 : index
    %c0_14 = arith.constant 0 : index
    %27 = vector.load %arg4[%c3, %c0_14] : memref<4x64xf32, #tpu.memory_space<vmem>>, vector<1x64xf32>
    %28 = vector.broadcast %27 : vector<1x64xf32> to vector<8x64xf32>
    %29 = arith.mulf %26, %28 : vector<8x64xf32>
    %30 = arith.addf %25, %29 : vector<8x64xf32>
    %c0_15 = arith.constant 0 : index
    %c0_16 = arith.constant 0 : index
    %31 = vector.load %arg5[%c0_15, %c0_16] : memref<1x64xf32, #tpu.memory_space<vmem>>, vector<1x64xf32>
    %32 = vector.broadcast %31 : vector<1x64xf32> to vector<8x64xf32>
    %33 = arith.addf %30, %32 : vector<8x64xf32>
    %cst_17 = arith.constant 0.000000e+00 : f32
    %34 = vector.broadcast %cst_17 : f32 to vector<8x64xf32>
    %35 = arith.subf %34, %33 : vector<8x64xf32>
    %36 = math.exp %35 : vector<8x64xf32>
    %cst_18 = arith.constant 1.000000e+00 : f32
    %37 = vector.broadcast %cst_18 : f32 to vector<8x64xf32>
    %38 = arith.addf %37, %36 : vector<8x64xf32>
    %cst_19 = arith.constant 1.000000e+00 : f32
    %39 = vector.broadcast %cst_19 : f32 to vector<8x64xf32>
    %40 = arith.divf %39, %38 : vector<8x64xf32>
    %41 = arith.mulf %33, %40 : vector<8x64xf32>
    %c0_20 = arith.constant 0 : index
    %c0_21 = arith.constant 0 : index
    %42 = vector.load %arg6[%c0_20, %c0_21] : memref<64x384xf32, #tpu.memory_space<vmem>>, vector<64x384xf32>
    %cst_22 = arith.constant dense<0.000000e+00> : vector<8x384xf32>
    %43 = tpu.matmul %41, %42, %cst_22 {dimension_numbers = #tpu.dot_dimension_numbers<[1], [0], [0], [1], [0, 0, 1, 1], [], []>} : vector<8x64xf32>, vector<64x384xf32>, vector<8x384xf32> -> vector<8x384xf32>
    %44 = vector.extract_strided_slice %43 {offsets = [0, 0], sizes = [8, 128], strides = [1, 1]} : vector<8x384xf32> to vector<8x128xf32>
    %c0_23 = arith.constant 0 : index
    %c0_24 = arith.constant 0 : index
    %45 = vector.load %arg7[%c0_23, %c0_24] : memref<128x64xf32, #tpu.memory_space<vmem>>, vector<128x64xf32>
    %cst_25 = arith.constant dense<0.000000e+00> : vector<8x64xf32>
    %46 = tpu.matmul %44, %45, %cst_25 {dimension_numbers = #tpu.dot_dimension_numbers<[1], [0], [0], [1], [0, 0, 1, 1], [], []>} : vector<8x128xf32>, vector<128x64xf32>, vector<8x64xf32> -> vector<8x64xf32>
    %c0_26 = arith.constant 0 : index
    %c0_27 = arith.constant 0 : index
    %47 = vector.load %arg8[%c0_26, %c0_27] : memref<1x64xf32, #tpu.memory_space<vmem>>, vector<1x64xf32>
    %48 = vector.broadcast %47 : vector<1x64xf32> to vector<8x64xf32>
    %49 = arith.addf %46, %48 : vector<8x64xf32>
    %cst_28 = arith.constant 2.000000e+01 : f32
    %50 = vector.broadcast %cst_28 : f32 to vector<8x64xf32>
    %51 = arith.cmpf ogt, %49, %50 : vector<8x64xf32>
    %52 = math.exp %49 : vector<8x64xf32>
    %53 = math.log1p %52 : vector<8x64xf32>
    %54 = arith.select %51, %49, %53 : vector<8x64xi1>, vector<8x64xf32>
    %c0_29 = arith.constant 0 : index
    %c0_30 = arith.constant 0 : index
    %55 = vector.load %arg15[%c0_29, %c0_30] : memref<8x64xf32, #tpu.memory_space<vmem>>, vector<8x64xf32>
    tpu.vector_store %arg15[%c0_29, %c0_30], %54 {strides = array<i32>} : memref<8x64xf32, #tpu.memory_space<vmem>>, vector<8x64xf32>,
    %56 = arith.mulf %54, %41 : vector<8x64xf32>
    %c0_31 = arith.constant 0 : index
    %c0_32 = arith.constant 0 : index
    %57 = vector.load %arg16[%c0_31, %c0_32] : memref<8x64xf32, #tpu.memory_space<vmem>>, vector<8x64xf32>
    tpu.vector_store %arg16[%c0_31, %c0_32], %56 {strides = array<i32>} : memref<8x64xf32, #tpu.memory_space<vmem>>, vector<8x64xf32>,
    %58 = vector.extract_strided_slice %43 {offsets = [0, 128], sizes = [8, 128], strides = [1, 1]} : vector<8x384xf32> to vector<8x128xf32>
    %c0_33 = arith.constant 0 : index
    %c0_34 = arith.constant 0 : index
    %59 = vector.load %arg17[%c0_33, %c0_34] : memref<8x128xf32, #tpu.memory_space<vmem>>, vector<8x128xf32>
    tpu.vector_store %arg17[%c0_33, %c0_34], %58 {strides = array<i32>} : memref<8x128xf32, #tpu.memory_space<vmem>>, vector<8x128xf32>,
    %60 = vector.extract_strided_slice %43 {offsets = [0, 256], sizes = [8, 128], strides = [1, 1]} : vector<8x384xf32> to vector<8x128xf32>
    %c0_35 = arith.constant 0 : index
    %c0_36 = arith.constant 0 : index
    %61 = vector.load %arg18[%c0_35, %c0_36] : memref<8x128xf32, #tpu.memory_space<vmem>>, vector<8x128xf32>
    tpu.vector_store %arg18[%c0_35, %c0_36], %60 {strides = array<i32>} : memref<8x128xf32, #tpu.memory_space<vmem>>, vector<8x128xf32>,
    %c0_37 = arith.constant 0 : index
    %c0_38 = arith.constant 0 : index
    %62 = vector.load %arg9[%c0_37, %c0_38] : memref<16x64xf32, #tpu.memory_space<vmem>>, vector<16x64xf32>
    %c0_39 = arith.constant 0 : index
    %c0_40 = arith.constant 0 : index
    %63 = vector.load %arg14[%c0_39, %c0_40] : memref<16x64xf32, #tpu.memory_space<vmem>>, vector<16x64xf32>
    %c0_i32_41 = arith.constant 0 : i32
    %c8_i32 = arith.constant 8 : i32
    %64 = arith.muli %c0_i32_41, %c8_i32 : i32
    %65 = tpu.assume_multiple %64, 8 : i32
    %66 = arith.index_cast %65 : i32 to index
    %c0_42 = arith.constant 0 : index
    %67 = vector.load %arg15[%66, %c0_42] : memref<8x64xf32, #tpu.memory_space<vmem>>, vector<8x64xf32>
    %68 = arith.index_cast %65 : i32 to index
    %c0_43 = arith.constant 0 : index
    %69 = vector.load %arg16[%68, %c0_43] : memref<8x64xf32, #tpu.memory_space<vmem>>, vector<8x64xf32>
    %70 = arith.index_cast %65 : i32 to index
    %c0_44 = arith.constant 0 : index
    %71 = vector.load %arg17[%70, %c0_44] : memref<8x128xf32, #tpu.memory_space<vmem>>, vector<8x16xf32>
    %72 = tpu.transpose %71, [1, 0] : vector<8x16xf32> -> vector<16x8xf32>
    %73 = arith.index_cast %65 : i32 to index
    %c0_45 = arith.constant 0 : index
    %74 = vector.load %arg18[%73, %c0_45] : memref<8x128xf32, #tpu.memory_space<vmem>>, vector<8x16xf32>
    %75 = tpu.transpose %74, [1, 0] : vector<8x16xf32> -> vector<16x8xf32>
    %76 = vector.extract_strided_slice %67 {offsets = [0, 0], sizes = [1, 64], strides = [1, 1]} : vector<8x64xf32> to vector<1x64xf32>
    %77 = vector.broadcast %76 : vector<1x64xf32> to vector<16x64xf32>
    %78 = arith.mulf %77, %62 : vector<16x64xf32>
    %79 = math.exp %78 : vector<16x64xf32>
    %80 = vector.extract_strided_slice %67 {offsets = [1, 0], sizes = [1, 64], strides = [1, 1]} : vector<8x64xf32> to vector<1x64xf32>
    %81 = vector.broadcast %80 : vector<1x64xf32> to vector<16x64xf32>
    %82 = arith.mulf %81, %62 : vector<16x64xf32>
    %83 = math.exp %82 : vector<16x64xf32>
    %84 = vector.extract_strided_slice %67 {offsets = [2, 0], sizes = [1, 64], strides = [1, 1]} : vector<8x64xf32> to vector<1x64xf32>
    %85 = vector.broadcast %84 : vector<1x64xf32> to vector<16x64xf32>
    %86 = arith.mulf %85, %62 : vector<16x64xf32>
    %87 = math.exp %86 : vector<16x64xf32>
    %88 = vector.extract_strided_slice %67 {offsets = [3, 0], sizes = [1, 64], strides = [1, 1]} : vector<8x64xf32> to vector<1x64xf32>
    %89 = vector.broadcast %88 : vector<1x64xf32> to vector<16x64xf32>
    %90 = arith.mulf %89, %62 : vector<16x64xf32>
    %91 = math.exp %90 : vector<16x64xf32>
    %92 = vector.extract_strided_slice %67 {offsets = [4, 0], sizes = [1, 64], strides = [1, 1]} : vector<8x64xf32> to vector<1x64xf32>
    %93 = vector.broadcast %92 : vector<1x64xf32> to vector<16x64xf32>
    %94 = arith.mulf %93, %62 : vector<16x64xf32>
    %95 = math.exp %94 : vector<16x64xf32>
    %96 = vector.extract_strided_slice %67 {offsets = [5, 0], sizes = [1, 64], strides = [1, 1]} : vector<8x64xf32> to vector<1x64xf32>
    %97 = vector.broadcast %96 : vector<1x64xf32> to vector<16x64xf32>
    %98 = arith.mulf %97, %62 : vector<16x64xf32>
    %99 = math.exp %98 : vector<16x64xf32>
    %100 = vector.extract_strided_slice %67 {offsets = [6, 0], sizes = [1, 64], strides = [1, 1]} : vector<8x64xf32> to vector<1x64xf32>
    %101 = vector.broadcast %100 : vector<1x64xf32> to vector<16x64xf32>
    %102 = arith.mulf %101, %62 : vector<16x64xf32>
    %103 = math.exp %102 : vector<16x64xf32>
    %104 = vector.extract_strided_slice %67 {offsets = [7, 0], sizes = [1, 64], strides = [1, 1]} : vector<8x64xf32> to vector<1x64xf32>
    %105 = vector.broadcast %104 : vector<1x64xf32> to vector<16x64xf32>
    %106 = arith.mulf %105, %62 : vector<16x64xf32>
    %107 = math.exp %106 : vector<16x64xf32>
    %108 = vector.extract_strided_slice %72 {offsets = [0, 0], sizes = [16, 1], strides = [1, 1]} : vector<16x8xf32> to vector<16x1xf32>
    %109 = vector.extract_strided_slice %69 {offsets = [0, 0], sizes = [1, 64], strides = [1, 1]} : vector<8x64xf32> to vector<1x64xf32>
    %110 = vector.broadcast %108 : vector<16x1xf32> to vector<16x64xf32>
    %111 = vector.broadcast %109 : vector<1x64xf32> to vector<16x64xf32>
    %112 = arith.mulf %110, %111 : vector<16x64xf32>
    %113 = vector.extract_strided_slice %72 {offsets = [0, 1], sizes = [16, 1], strides = [1, 1]} : vector<16x8xf32> to vector<16x1xf32>
    %114 = vector.extract_strided_slice %69 {offsets = [1, 0], sizes = [1, 64], strides = [1, 1]} : vector<8x64xf32> to vector<1x64xf32>
    %115 = vector.broadcast %113 : vector<16x1xf32> to vector<16x64xf32>
    %116 = vector.broadcast %114 : vector<1x64xf32> to vector<16x64xf32>
    %117 = arith.mulf %115, %116 : vector<16x64xf32>
    %118 = vector.extract_strided_slice %72 {offsets = [0, 2], sizes = [16, 1], strides = [1, 1]} : vector<16x8xf32> to vector<16x1xf32>
    %119 = vector.extract_strided_slice %69 {offsets = [2, 0], sizes = [1, 64], strides = [1, 1]} : vector<8x64xf32> to vector<1x64xf32>
    %120 = vector.broadcast %118 : vector<16x1xf32> to vector<16x64xf32>
    %121 = vector.broadcast %119 : vector<1x64xf32> to vector<16x64xf32>
    %122 = arith.mulf %120, %121 : vector<16x64xf32>
    %123 = vector.extract_strided_slice %72 {offsets = [0, 3], sizes = [16, 1], strides = [1, 1]} : vector<16x8xf32> to vector<16x1xf32>
    %124 = vector.extract_strided_slice %69 {offsets = [3, 0], sizes = [1, 64], strides = [1, 1]} : vector<8x64xf32> to vector<1x64xf32>
    %125 = vector.broadcast %123 : vector<16x1xf32> to vector<16x64xf32>
    %126 = vector.broadcast %124 : vector<1x64xf32> to vector<16x64xf32>
    %127 = arith.mulf %125, %126 : vector<16x64xf32>
    %128 = vector.extract_strided_slice %72 {offsets = [0, 4], sizes = [16, 1], strides = [1, 1]} : vector<16x8xf32> to vector<16x1xf32>
    %129 = vector.extract_strided_slice %69 {offsets = [4, 0], sizes = [1, 64], strides = [1, 1]} : vector<8x64xf32> to vector<1x64xf32>
    %130 = vector.broadcast %128 : vector<16x1xf32> to vector<16x64xf32>
    %131 = vector.broadcast %129 : vector<1x64xf32> to vector<16x64xf32>
    %132 = arith.mulf %130, %131 : vector<16x64xf32>
    %133 = vector.extract_strided_slice %72 {offsets = [0, 5], sizes = [16, 1], strides = [1, 1]} : vector<16x8xf32> to vector<16x1xf32>
    %134 = vector.extract_strided_slice %69 {offsets = [5, 0], sizes = [1, 64], strides = [1, 1]} : vector<8x64xf32> to vector<1x64xf32>
    %135 = vector.broadcast %133 : vector<16x1xf32> to vector<16x64xf32>
    %136 = vector.broadcast %134 : vector<1x64xf32> to vector<16x64xf32>
    %137 = arith.mulf %135, %136 : vector<16x64xf32>
    %138 = vector.extract_strided_slice %72 {offsets = [0, 6], sizes = [16, 1], strides = [1, 1]} : vector<16x8xf32> to vector<16x1xf32>
    %139 = vector.extract_strided_slice %69 {offsets = [6, 0], sizes = [1, 64], strides = [1, 1]} : vector<8x64xf32> to vector<1x64xf32>
    %140 = vector.broadcast %138 : vector<16x1xf32> to vector<16x64xf32>
    %141 = vector.broadcast %139 : vector<1x64xf32> to vector<16x64xf32>
    %142 = arith.mulf %140, %141 : vector<16x64xf32>
    %143 = vector.extract_strided_slice %72 {offsets = [0, 7], sizes = [16, 1], strides = [1, 1]} : vector<16x8xf32> to vector<16x1xf32>
    %144 = vector.extract_strided_slice %69 {offsets = [7, 0], sizes = [1, 64], strides = [1, 1]} : vector<8x64xf32> to vector<1x64xf32>
    %145 = vector.broadcast %143 : vector<16x1xf32> to vector<16x64xf32>
    %146 = vector.broadcast %144 : vector<1x64xf32> to vector<16x64xf32>
    %147 = arith.mulf %145, %146 : vector<16x64xf32>
    %148 = arith.mulf %79, %63 : vector<16x64xf32>
    %149 = arith.addf %148, %112 : vector<16x64xf32>
    %150 = vector.extract_strided_slice %75 {offsets = [0, 0], sizes = [16, 1], strides = [1, 1]} : vector<16x8xf32> to vector<16x1xf32>
    %151 = vector.broadcast %150 : vector<16x1xf32> to vector<16x64xf32>
    %152 = arith.mulf %149, %151 : vector<16x64xf32>
    %cst_46 = arith.constant dense<0.000000e+00> : vector<64xf32>
    %153 = vector.multi_reduction <add>, %152, %cst_46 [0] : vector<16x64xf32> to vector<64xf32>
    %154 = vector.shape_cast %153 : vector<64xf32> to vector<1x64xf32>
    %155 = arith.mulf %83, %149 : vector<16x64xf32>
    %156 = arith.addf %155, %117 : vector<16x64xf32>
    %157 = vector.extract_strided_slice %75 {offsets = [0, 1], sizes = [16, 1], strides = [1, 1]} : vector<16x8xf32> to vector<16x1xf32>
    %158 = vector.broadcast %157 : vector<16x1xf32> to vector<16x64xf32>
    %159 = arith.mulf %156, %158 : vector<16x64xf32>
    %cst_47 = arith.constant dense<0.000000e+00> : vector<64xf32>
    %160 = vector.multi_reduction <add>, %159, %cst_47 [0] : vector<16x64xf32> to vector<64xf32>
    %161 = vector.shape_cast %160 : vector<64xf32> to vector<1x64xf32>
    %162 = arith.mulf %87, %156 : vector<16x64xf32>
    %163 = arith.addf %162, %122 : vector<16x64xf32>
    %164 = vector.extract_strided_slice %75 {offsets = [0, 2], sizes = [16, 1], strides = [1, 1]} : vector<16x8xf32> to vector<16x1xf32>
    %165 = vector.broadcast %164 : vector<16x1xf32> to vector<16x64xf32>
    %166 = arith.mulf %163, %165 : vector<16x64xf32>
    %cst_48 = arith.constant dense<0.000000e+00> : vector<64xf32>
    %167 = vector.multi_reduction <add>, %166, %cst_48 [0] : vector<16x64xf32> to vector<64xf32>
    %168 = vector.shape_cast %167 : vector<64xf32> to vector<1x64xf32>
    %169 = arith.mulf %91, %163 : vector<16x64xf32>
    %170 = arith.addf %169, %127 : vector<16x64xf32>
    %171 = vector.extract_strided_slice %75 {offsets = [0, 3], sizes = [16, 1], strides = [1, 1]} : vector<16x8xf32> to vector<16x1xf32>
    %172 = vector.broadcast %171 : vector<16x1xf32> to vector<16x64xf32>
    %173 = arith.mulf %170, %172 : vector<16x64xf32>
    %cst_49 = arith.constant dense<0.000000e+00> : vector<64xf32>
    %174 = vector.multi_reduction <add>, %173, %cst_49 [0] : vector<16x64xf32> to vector<64xf32>
    %175 = vector.shape_cast %174 : vector<64xf32> to vector<1x64xf32>
    %176 = arith.mulf %95, %170 : vector<16x64xf32>
    %177 = arith.addf %176, %132 : vector<16x64xf32>
    %178 = vector.extract_strided_slice %75 {offsets = [0, 4], sizes = [16, 1], strides = [1, 1]} : vector<16x8xf32> to vector<16x1xf32>
    %179 = vector.broadcast %178 : vector<16x1xf32> to vector<16x64xf32>
    %180 = arith.mulf %177, %179 : vector<16x64xf32>
    %cst_50 = arith.constant dense<0.000000e+00> : vector<64xf32>
    %181 = vector.multi_reduction <add>, %180, %cst_50 [0] : vector<16x64xf32> to vector<64xf32>
    %182 = vector.shape_cast %181 : vector<64xf32> to vector<1x64xf32>
    %183 = arith.mulf %99, %177 : vector<16x64xf32>
    %184 = arith.addf %183, %137 : vector<16x64xf32>
    %185 = vector.extract_strided_slice %75 {offsets = [0, 5], sizes = [16, 1], strides = [1, 1]} : vector<16x8xf32> to vector<16x1xf32>
    %186 = vector.broadcast %185 : vector<16x1xf32> to vector<16x64xf32>
    %187 = arith.mulf %184, %186 : vector<16x64xf32>
    %cst_51 = arith.constant dense<0.000000e+00> : vector<64xf32>
    %188 = vector.multi_reduction <add>, %187, %cst_51 [0] : vector<16x64xf32> to vector<64xf32>
    %189 = vector.shape_cast %188 : vector<64xf32> to vector<1x64xf32>
    %190 = arith.mulf %103, %184 : vector<16x64xf32>
    %191 = arith.addf %190, %142 : vector<16x64xf32>
    %192 = vector.extract_strided_slice %75 {offsets = [0, 6], sizes = [16, 1], strides = [1, 1]} : vector<16x8xf32> to vector<16x1xf32>
    %193 = vector.broadcast %192 : vector<16x1xf32> to vector<16x64xf32>
    %194 = arith.mulf %191, %193 : vector<16x64xf32>
    %cst_52 = arith.constant dense<0.000000e+00> : vector<64xf32>
    %195 = vector.multi_reduction <add>, %194, %cst_52 [0] : vector<16x64xf32> to vector<64xf32>
    %196 = vector.shape_cast %195 : vector<64xf32> to vector<1x64xf32>
    %197 = arith.mulf %107, %191 : vector<16x64xf32>
    %198 = arith.addf %197, %147 : vector<16x64xf32>
    %199 = vector.extract_strided_slice %75 {offsets = [0, 7], sizes = [16, 1], strides = [1, 1]} : vector<16x8xf32> to vector<16x1xf32>
    %200 = vector.broadcast %199 : vector<16x1xf32> to vector<16x64xf32>
    %201 = arith.mulf %198, %200 : vector<16x64xf32>
    %cst_53 = arith.constant dense<0.000000e+00> : vector<64xf32>
    %202 = vector.multi_reduction <add>, %201, %cst_53 [0] : vector<16x64xf32> to vector<64xf32>
    %203 = vector.shape_cast %202 : vector<64xf32> to vector<1x64xf32>
    %204 = tpu.concatenate %154, %161, %168, %175, %182, %189, %196, %203 in 0 : vector<1x64xf32>, vector<1x64xf32>, vector<1x64xf32>, vector<1x64xf32>, vector<1x64xf32>, vector<1x64xf32>, vector<1x64xf32>, vector<1x64xf32> -> vector<8x64xf32>
    %205 = arith.index_cast %65 : i32 to index
    %c0_54 = arith.constant 0 : index
    %206 = vector.load %arg16[%205, %c0_54] : memref<8x64xf32, #tpu.memory_space<vmem>>, vector<8x64xf32>
    tpu.vector_store %arg16[%205, %c0_54], %204 {strides = array<i32>} : memref<8x64xf32, #tpu.memory_space<vmem>>, vector<8x64xf32>,
    %c1_i32 = arith.constant 1 : i32
    %c0_55 = arith.constant 0 : index
    %c0_56 = arith.constant 0 : index
    %207 = vector.load %arg14[%c0_55, %c0_56] : memref<16x64xf32, #tpu.memory_space<vmem>>, vector<16x64xf32>
    tpu.vector_store %arg14[%c0_55, %c0_56], %198 {strides = array<i32>} : memref<16x64xf32, #tpu.memory_space<vmem>>, vector<16x64xf32>,
    %c0_57 = arith.constant 0 : index
    %c0_58 = arith.constant 0 : index
    %208 = vector.load %arg16[%c0_57, %c0_58] : memref<8x64xf32, #tpu.memory_space<vmem>>, vector<8x64xf32>
    %c0_59 = arith.constant 0 : index
    %c0_60 = arith.constant 0 : index
    %209 = vector.load %arg10[%c0_59, %c0_60] : memref<1x64xf32, #tpu.memory_space<vmem>>, vector<1x64xf32>
    %210 = vector.broadcast %209 : vector<1x64xf32> to vector<8x64xf32>
    %211 = arith.mulf %210, %41 : vector<8x64xf32>
    %212 = arith.addf %208, %211 : vector<8x64xf32>
    %cst_61 = arith.constant 0.000000e+00 : f32
    %213 = vector.broadcast %cst_61 : f32 to vector<8x64xf32>
    %214 = arith.subf %213, %8 : vector<8x64xf32>
    %215 = math.exp %214 : vector<8x64xf32>
    %cst_62 = arith.constant 1.000000e+00 : f32
    %216 = vector.broadcast %cst_62 : f32 to vector<8x64xf32>
    %217 = arith.addf %216, %215 : vector<8x64xf32>
    %cst_63 = arith.constant 1.000000e+00 : f32
    %218 = vector.broadcast %cst_63 : f32 to vector<8x64xf32>
    %219 = arith.divf %218, %217 : vector<8x64xf32>
    %220 = arith.mulf %8, %219 : vector<8x64xf32>
    %221 = arith.mulf %212, %220 : vector<8x64xf32>
    %c0_64 = arith.constant 0 : index
    %c0_65 = arith.constant 0 : index
    %222 = vector.load %arg11[%c0_64, %c0_65] : memref<64x32xf32, #tpu.memory_space<vmem>>, vector<64x32xf32>
    %cst_66 = arith.constant dense<0.000000e+00> : vector<8x32xf32>
    %223 = tpu.matmul %221, %222, %cst_66 {dimension_numbers = #tpu.dot_dimension_numbers<[1], [0], [0], [1], [0, 0, 1, 1], [], []>} : vector<8x64xf32>, vector<64x32xf32>, vector<8x32xf32> -> vector<8x32xf32>
    %c0_67 = arith.constant 0 : index
    %c0_68 = arith.constant 0 : index
    %c0_69 = arith.constant 0 : index
    %224 = vector.load %arg12[%c0_67, %c0_68, %c0_69] : memref<1x8x32xf32, #tpu.memory_space<vmem>>, vector<1x8x32xf32>
    %225 = vector.shape_cast %224 : vector<1x8x32xf32> to vector<8x32xf32>
    %226 = vector.shape_cast %223 : vector<8x32xf32> to vector<1x8x32xf32>
    tpu.vector_store %arg12[%c0_67, %c0_68, %c0_69], %226 {strides = array<i32>} : memref<1x8x32xf32, #tpu.memory_space<vmem>>, vector<1x8x32xf32>,
    return
  }
  func.func @transform_0(%arg0: i32, %arg1: i32) -> (i32, i32, i32) {
    %c0_i32 = arith.constant 0 : i32
    %c0_i32_0 = arith.constant 0 : i32
    return %arg0, %arg1, %c0_i32 : i32, i32, i32
  }
  func.func @transform_1(%arg0: i32, %arg1: i32) -> (i32, i32) {
    %c0_i32 = arith.constant 0 : i32
    %c0_i32_0 = arith.constant 0 : i32
    %c0_i32_1 = arith.constant 0 : i32
    return %c0_i32, %c0_i32_0 : i32, i32
  }
  func.func @transform_2(%arg0: i32, %arg1: i32) -> (i32, i32) {
    %c0_i32 = arith.constant 0 : i32
    %c0_i32_0 = arith.constant 0 : i32
    %c0_i32_1 = arith.constant 0 : i32
    return %c0_i32, %c0_i32_0 : i32, i32
  }
  func.func @transform_3(%arg0: i32, %arg1: i32) -> (i32, i32) {
    %c0_i32 = arith.constant 0 : i32
    %c0_i32_0 = arith.constant 0 : i32
    %c0_i32_1 = arith.constant 0 : i32
    return %c0_i32, %c0_i32_0 : i32, i32
  }
  func.func @transform_4(%arg0: i32, %arg1: i32) -> (i32, i32) {
    %c0_i32 = arith.constant 0 : i32
    %c0_i32_0 = arith.constant 0 : i32
    %c0_i32_1 = arith.constant 0 : i32
    return %c0_i32, %c0_i32_0 : i32, i32
  }
  func.func @transform_5(%arg0: i32, %arg1: i32) -> (i32, i32) {
    %c0_i32 = arith.constant 0 : i32
    %c0_i32_0 = arith.constant 0 : i32
    %c0_i32_1 = arith.constant 0 : i32
    return %c0_i32, %c0_i32_0 : i32, i32
  }
  func.func @transform_6(%arg0: i32, %arg1: i32) -> (i32, i32) {
    %c0_i32 = arith.constant 0 : i32
    %c0_i32_0 = arith.constant 0 : i32
    %c0_i32_1 = arith.constant 0 : i32
    return %c0_i32, %c0_i32_0 : i32, i32
  }
  func.func @transform_7(%arg0: i32, %arg1: i32) -> (i32, i32) {
    %c0_i32 = arith.constant 0 : i32
    %c0_i32_0 = arith.constant 0 : i32
    %c0_i32_1 = arith.constant 0 : i32
    return %c0_i32, %c0_i32_0 : i32, i32
  }
  func.func @transform_8(%arg0: i32, %arg1: i32) -> (i32, i32) {
    %c0_i32 = arith.constant 0 : i32
    %c0_i32_0 = arith.constant 0 : i32
    %c0_i32_1 = arith.constant 0 : i32
    return %c0_i32, %c0_i32_0 : i32, i32
  }
  func.func @transform_9(%arg0: i32, %arg1: i32) -> (i32, i32) {
    %c0_i32 = arith.constant 0 : i32
    %c0_i32_0 = arith.constant 0 : i32
    %c0_i32_1 = arith.constant 0 : i32
    return %c0_i32, %c0_i32_0 : i32, i32
  }
  func.func @transform_10(%arg0: i32, %arg1: i32) -> (i32, i32, i32) {
    %c0_i32 = arith.constant 0 : i32
    %c0_i32_0 = arith.constant 0 : i32
    return %arg0, %arg1, %c0_i32 : i32, i32, i32
  }
}

</mosaic_0001>

<llo_original>
// kernel: tpu_custom_call.1
$region0: #{tpu_custom_call.1}
  #allocation0 [shape = 'u32[]', space=smem, size = 0x4, offset = 0x4, fixed_abs, tag = 'smem constant byte address 0x4 - core index']
  #allocation1 [shape = 'u32[144,128]{1,0:T(1,128)}', space=vmem, size = 0x12000, scoped, tag = 'internal scratch']
  #allocation2 [shape = 'f32[16,64]{1,0:T(8,128)}', space=vmem, size = 0x2000, scoped, tag = 'scratch operand']
  #allocation3 [shape = 'f32[16,64]{1,0:T(8,128)}', space=vmem, size = 0x2000, scoped, tag = 'scratch operand']
  #allocation4 [shape = 'f32[8,64]{1,0:T(8,128)}', space=vmem, size = 0x1000, scoped, tag = 'scratch operand']
  #allocation5 [shape = 'f32[8,64]{1,0:T(8,128)}', space=vmem, size = 0x1000, scoped, tag = 'scratch operand']
  #allocation6 [shape = 'f32[8,128]{1,0:T(8,128)}', space=vmem, size = 0x1000, scoped, tag = 'scratch operand']
  #allocation7 [shape = 'f32[8,128]{1,0:T(8,128)}', space=vmem, size = 0x1000, scoped, tag = 'scratch operand']
  %s0 = inlined_call_operand.hbm [shape: f32[2,8,32], index: 0, kind: input, shape index: {}]
  %s1 = inlined_call_operand.vmem [shape: f32[32,128], index: 1, kind: input, shape index: {}]
  %s2 = inlined_call_operand.hbm [shape: f32[4,64], index: 2, kind: input, shape index: {}]
  %s3 = inlined_call_operand.vmem [shape: f32[1,64], index: 3, kind: input, shape index: {}]
  %s4 = inlined_call_operand.vmem [shape: f32[64,384], index: 4, kind: input, shape index: {}]
  %s5 = inlined_call_operand.vmem [shape: f32[128,64], index: 5, kind: input, shape index: {}]
  %s6 = inlined_call_operand.vmem [shape: f32[1,64], index: 6, kind: input, shape index: {}]
  %s7 = inlined_call_operand.hbm [shape: f32[16,64], index: 7, kind: input, shape index: {}]
  %s8 = inlined_call_operand.hbm [shape: f32[1,64], index: 8, kind: input, shape index: {}]
  %s9 = inlined_call_operand.vmem [shape: f32[64,32], index: 9, kind: input, shape index: {}]
  %s10 = inlined_call_operand.hbm [shape: f32[2,8,32], index: 10, kind: output, shape index: {}]
  %s11 = sld [smem:[#allocation0]]
  $region93: #{tpu_custom_call.1} parent=0
    _
  %s13 = ssub.s32 1, %s11
  %s14 = scalar_select 0, %s13, %s11
  $region1: #{tpu_custom_call.1} parent=0
    #allocation8 [shape = 'u8[8192]{0}', space=vmem, size = 0x2000, scoped, tag = 'input window, operand 0']
    #allocation9 [shape = 's32[2]{0}', space=sflag, size = 0x8, scoped, tag = 'scoped memory for tpu_custom_call.1']
    #allocation10 [shape = 's32[2]{0}', space=sflag, size = 0x8, scoped, tag = 'scoped memory for tpu_custom_call.1']
    #allocation11 [shape = 'u8[2048]{0}', space=vmem, size = 0x800, scoped, tag = 'input window, operand 2, single buffered']
    #allocation12 [shape = 's32[1]{0}', space=sflag, size = 0x4, scoped, tag = 'scoped memory for tpu_custom_call.1']
    #allocation13 [shape = 'u8[8192]{0}', space=vmem, size = 0x2000, scoped, tag = 'input window, operand 7, single buffered']
    #allocation14 [shape = 'u8[512]{0}', space=vmem, size = 0x400, scoped, tag = 'input window, operand 8, single buffered']
    #allocation15 [shape = 's32[1]{0}', space=sflag, size = 0x4, scoped, tag = 'scoped memory for tpu_custom_call.1']
    #allocation16 [shape = 'u8[8192]{0}', space=vmem, size = 0x2000, scoped, tag = 'output window, operand 0']
    %15 = vsyncpa [#allocation9], 0
    %s16 = scalar_lea.sflag [#allocation9], 1
    %17 = vsyncpa %s16, 0
    %18 = vsyncpa [#allocation12], 0
    %19 = vsyncpa [#allocation15], 0
    %20 = vsyncpa [#allocation10], 0
    %s21 = scalar_lea.sflag [#allocation10], 1
    %22 = vsyncpa %s21, 0
    loop: start=0, step=1, limit=4
    $region2: #{tpu_custom_call.1} parent=1 // loop_pre_header
      _
    $region3: #{tpu_custom_call.1} parent=1 // loop_header
      %s24 = sphi 0, %s28
      %p25 = scmp.ge.s32.totalorder %s24, 4
      %s31 = sphi 0, %s43
      %s32 = sphi 0, %s39
      %s33 = sphi 0, %s31
      %s34 = sphi 0, %s32
      %s35 = sphi 0, %s33
      %s36 = sphi 0, %s34
      %s48 = sphi 0, %s50
      %s51 = sphi 0, %s48
      %s52 = sphi 0, %s51
      %s68 = sphi 0, %s52
      %s72 = sphi 0, %s72
      %s74 = sphi 0, %s72
      %s75 = sphi 0, %s74
      %s89 = sphi 0, %s75
      %s93 = sphi 0, %s93
      %s95 = sphi 0, %s93
      %s96 = sphi 0, %s95
      %s110 = sphi 0, %s96
      %s114 = sphi 0, %s114
      %s116 = sphi 0, %s114
      %s117 = sphi 0, %s116
      %s131 = sphi 0, %s117
      %s135 = sphi 0, %s135
      %s137 = sphi 0, %s135
      %s138 = sphi 0, %s137
      %s152 = sphi 0, %s138
      %s156 = sphi 0, %s156
      %s158 = sphi 0, %s156
      %s159 = sphi 0, %s158
      %s173 = sphi 0, %s159
      %s177 = sphi 0, %s177
      %s179 = sphi 0, %s177
      %s180 = sphi 0, %s179
      %s194 = sphi 0, %s180
      %s198 = sphi 0, %s198
      %s200 = sphi 0, %s198
      %s201 = sphi 0, %s200
      %s215 = sphi 0, %s201
      %s219 = sphi 0, %s219
      %s221 = sphi 0, %s219
      %s222 = sphi 0, %s221
      %s236 = sphi 0, %s222
      %s240 = sphi 0, %s240
      %s242 = sphi 0, %s240
      %s243 = sphi 0, %s242
      %s257 = sphi 0, %s243
      %s265 = sphi 0, %s267
      %s268 = sphi 0, %s265
      %s269 = sphi 0, %s268
      %s285 = sphi 0, %s269
    $region4: #{tpu_custom_call.1} parent=1 // loop_header_branch
      %27 = sbr.rel (%p25) target = $region8
    $region5: #{tpu_custom_call.1} parent=1 // loop_body
      %s29 = ssub.s32 %s24, 1
      %s30 = ssub.s32 %s24, 2
      %s37 = sadd.s32 1, %s32
      %p38 = scmp.ge.s32.totalorder %s37, 1
      %s39 = scalar_select %p38, 0, %s37
      %s40 = sadd.s32 1, %s31
      %s41 = scalar_select %p38, %s40, %s31
      %p42 = scmp.ge.s32.totalorder %s41, 2
      %s43 = scalar_select %p42, 0, %s41
      %s44 = ssub.s32 %s31, %s43
      %s45 = ssub.s32 %s32, %s39
      %s46 = sor.u32 %s44, %s45
      %p47 = scmp.eq.s32.totalorder %s46, 0
      %s49 = sadd.s32 %s48, 1
      %s50 = scalar_select %p47, %s48, %s49
      %p53 = pneg %p47
      %p54 = scmp.eq.s32.totalorder %s24, 1
      %p55 = por %p53, %p54
      %p56 = scmp.ne.s32.totalorder %s48, %s51
      %p57 = scmp.eq.s32.totalorder %s24, 0
      %p58 = por %p56, %p57
      %p59 = scmp.ne.s32.totalorder %s48, %s51
      %p60 = scmp.eq.s32.totalorder %s29, 1
      %p61 = por %p59, %p60
      %p62 = scmp.ne.s32.totalorder %s51, %s52
      %p63 = scmp.eq.s32.totalorder %s29, 0
      %p64 = por %p62, %p63
      %p65 = scmp.ne.s32.totalorder %s51, %s52
      %p66 = scmp.eq.s32.totalorder %s30, 1
      %p67 = por %p65, %p66
      %p69 = scmp.ne.s32.totalorder %s52, %s68
      %p70 = scmp.eq.s32.totalorder %s30, 0
      %p71 = por %p69, %p70
      %s73 = sadd.s32 %s72, 1
      %p76 = scmp.eq.s32.totalorder %s24, 1
      %p77 = scmp.ne.s32.totalorder %s72, %s74
      %p78 = scmp.eq.s32.totalorder %s24, 0
      %p79 = por %p77, %p78
      %p80 = scmp.ne.s32.totalorder %s72, %s74
      %p81 = scmp.eq.s32.totalorder %s29, 1
      %p82 = por %p80, %p81
      %p83 = scmp.ne.s32.totalorder %s74, %s75
      %p84 = scmp.eq.s32.totalorder %s29, 0
      %p85 = por %p83, %p84
      %p86 = scmp.ne.s32.totalorder %s74, %s75
      %p87 = scmp.eq.s32.totalorder %s30, 1
      %p88 = por %p86, %p87
      %p90 = scmp.ne.s32.totalorder %s75, %s89
      %p91 = scmp.eq.s32.totalorder %s30, 0
      %p92 = por %p90, %p91
      %s94 = sadd.s32 %s93, 1
      %p97 = scmp.eq.s32.totalorder %s24, 1
      %p98 = scmp.ne.s32.totalorder %s93, %s95
      %p99 = scmp.eq.s32.totalorder %s24, 0
      %p100 = por %p98, %p99
      %p101 = scmp.ne.s32.totalorder %s93, %s95
      %p102 = scmp.eq.s32.totalorder %s29, 1
      %p103 = por %p101, %p102
      %p104 = scmp.ne.s32.totalorder %s95, %s96
      %p105 = scmp.eq.s32.totalorder %s29, 0
      %p106 = por %p104, %p105
      %p107 = scmp.ne.s32.totalorder %s95, %s96
      %p108 = scmp.eq.s32.totalorder %s30, 1
      %p109 = por %p107, %p108
      %p111 = scmp.ne.s32.totalorder %s96, %s110
      %p112 = scmp.eq.s32.totalorder %s30, 0
      %p113 = por %p111, %p112
      %s115 = sadd.s32 %s114, 1
      %p118 = scmp.eq.s32.totalorder %s24, 1
      %p119 = scmp.ne.s32.totalorder %s114, %s116
      %p120 = scmp.eq.s32.totalorder %s24, 0
      %p121 = por %p119, %p120
      %p122 = scmp.ne.s32.totalorder %s114, %s116
      %p123 = scmp.eq.s32.totalorder %s29, 1
      %p124 = por %p122, %p123
      %p125 = scmp.ne.s32.totalorder %s116, %s117
      %p126 = scmp.eq.s32.totalorder %s29, 0
      %p127 = por %p125, %p126
      %p128 = scmp.ne.s32.totalorder %s116, %s117
      %p129 = scmp.eq.s32.totalorder %s30, 1
      %p130 = por %p128, %p129
      %p132 = scmp.ne.s32.totalorder %s117, %s131
      %p133 = scmp.eq.s32.totalorder %s30, 0
      %p134 = por %p132, %p133
      %s136 = sadd.s32 %s135, 1
      %p139 = scmp.eq.s32.totalorder %s24, 1
      %p140 = scmp.ne.s32.totalorder %s135, %s137
      %p141 = scmp.eq.s32.totalorder %s24, 0
      %p142 = por %p140, %p141
      %p143 = scmp.ne.s32.totalorder %s135, %s137
      %p144 = scmp.eq.s32.totalorder %s29, 1
      %p145 = por %p143, %p144
      %p146 = scmp.ne.s32.totalorder %s137, %s138
      %p147 = scmp.eq.s32.totalorder %s29, 0
      %p148 = por %p146, %p147
      %p149 = scmp.ne.s32.totalorder %s137, %s138
      %p150 = scmp.eq.s32.totalorder %s30, 1
      %p151 = por %p149, %p150
      %p153 = scmp.ne.s32.totalorder %s138, %s152
      %p154 = scmp.eq.s32.totalorder %s30, 0
      %p155 = por %p153, %p154
      %s157 = sadd.s32 %s156, 1
      %p160 = scmp.eq.s32.totalorder %s24, 1
      %p161 = scmp.ne.s32.totalorder %s156, %s158
      %p162 = scmp.eq.s32.totalorder %s24, 0
      %p163 = por %p161, %p162
      %p164 = scmp.ne.s32.totalorder %s156, %s158
      %p165 = scmp.eq.s32.totalorder %s29, 1
      %p166 = por %p164, %p165
      %p167 = scmp.ne.s32.totalorder %s158, %s159
      %p168 = scmp.eq.s32.totalorder %s29, 0
      %p169 = por %p167, %p168
      %p170 = scmp.ne.s32.totalorder %s158, %s159
      %p171 = scmp.eq.s32.totalorder %s30, 1
      %p172 = por %p170, %p171
      %p174 = scmp.ne.s32.totalorder %s159, %s173
      %p175 = scmp.eq.s32.totalorder %s30, 0
      %p176 = por %p174, %p175
      %s178 = sadd.s32 %s177, 1
      %p181 = scmp.eq.s32.totalorder %s24, 1
      %p182 = scmp.ne.s32.totalorder %s177, %s179
      %p183 = scmp.eq.s32.totalorder %s24, 0
      %p184 = por %p182, %p183
      %p185 = scmp.ne.s32.totalorder %s177, %s179
      %p186 = scmp.eq.s32.totalorder %s29, 1
      %p187 = por %p185, %p186
      %p188 = scmp.ne.s32.totalorder %s179, %s180
      %p189 = scmp.eq.s32.totalorder %s29, 0
      %p190 = por %p188, %p189
      %p191 = scmp.ne.s32.totalorder %s179, %s180
      %p192 = scmp.eq.s32.totalorder %s30, 1
      %p193 = por %p191, %p192
      %p195 = scmp.ne.s32.totalorder %s180, %s194
      %p196 = scmp.eq.s32.totalorder %s30, 0
      %p197 = por %p195, %p196
      %s199 = sadd.s32 %s198, 1
      %p202 = scmp.eq.s32.totalorder %s24, 1
      %p203 = scmp.ne.s32.totalorder %s198, %s200
      %p204 = scmp.eq.s32.totalorder %s24, 0
      %p205 = por %p203, %p204
      %p206 = scmp.ne.s32.totalorder %s198, %s200
      %p207 = scmp.eq.s32.totalorder %s29, 1
      %p208 = por %p206, %p207
      %p209 = scmp.ne.s32.totalorder %s200, %s201
      %p210 = scmp.eq.s32.totalorder %s29, 0
      %p211 = por %p209, %p210
      %p212 = scmp.ne.s32.totalorder %s200, %s201
      %p213 = scmp.eq.s32.totalorder %s30, 1
      %p214 = por %p212, %p213
      %p216 = scmp.ne.s32.totalorder %s201, %s215
      %p217 = scmp.eq.s32.totalorder %s30, 0
      %p218 = por %p216, %p217
      %s220 = sadd.s32 %s219, 1
      %p223 = scmp.eq.s32.totalorder %s24, 1
      %p224 = scmp.ne.s32.totalorder %s219, %s221
      %p225 = scmp.eq.s32.totalorder %s24, 0
      %p226 = por %p224, %p225
      %p227 = scmp.ne.s32.totalorder %s219, %s221
      %p228 = scmp.eq.s32.totalorder %s29, 1
      %p229 = por %p227, %p228
      %p230 = scmp.ne.s32.totalorder %s221, %s222
      %p231 = scmp.eq.s32.totalorder %s29, 0
      %p232 = por %p230, %p231
      %p233 = scmp.ne.s32.totalorder %s221, %s222
      %p234 = scmp.eq.s32.totalorder %s30, 1
      %p235 = por %p233, %p234
      %p237 = scmp.ne.s32.totalorder %s222, %s236
      %p238 = scmp.eq.s32.totalorder %s30, 0
      %p239 = por %p237, %p238
      %s241 = sadd.s32 %s240, 1
      %p244 = scmp.eq.s32.totalorder %s24, 1
      %p245 = scmp.ne.s32.totalorder %s240, %s242
      %p246 = scmp.eq.s32.totalorder %s24, 0
      %p247 = por %p245, %p246
      %p248 = scmp.ne.s32.totalorder %s240, %s242
      %p249 = scmp.eq.s32.totalorder %s29, 1
      %p250 = por %p248, %p249
      %p251 = scmp.ne.s32.totalorder %s242, %s243
      %p252 = scmp.eq.s32.totalorder %s29, 0
      %p253 = por %p251, %p252
      %p254 = scmp.ne.s32.totalorder %s242, %s243
      %p255 = scmp.eq.s32.totalorder %s30, 1
      %p256 = por %p254, %p255
      %p258 = scmp.ne.s32.totalorder %s243, %s257
      %p259 = scmp.eq.s32.totalorder %s30, 0
      %p260 = por %p258, %p259
      %s261 = ssub.s32 %s31, %s43
      %s262 = ssub.s32 %s32, %s39
      %s263 = sor.u32 %s261, %s262
      %p264 = scmp.eq.s32.totalorder %s263, 0
      %s266 = sadd.s32 %s265, 1
      %s267 = scalar_select %p264, %s265, %s266
      %p270 = pneg %p264
      %p271 = scmp.eq.s32.totalorder %s24, 1
      %p272 = por %p270, %p271
      %p273 = scmp.ne.s32.totalorder %s265, %s268
      %p274 = scmp.eq.s32.totalorder %s24, 0
      %p275 = por %p273, %p274
      %p276 = scmp.ne.s32.totalorder %s265, %s268
      %p277 = scmp.eq.s32.totalorder %s29, 1
      %p278 = por %p276, %p277
      %p279 = scmp.ne.s32.totalorder %s268, %s269
      %p280 = scmp.eq.s32.totalorder %s29, 0
      %p281 = por %p279, %p280
      %p282 = scmp.ne.s32.totalorder %s268, %s269
      %p283 = scmp.eq.s32.totalorder %s30, 1
      %p284 = por %p282, %p283
      %p286 = scmp.ne.s32.totalorder %s269, %s285
      %p287 = scmp.eq.s32.totalorder %s30, 0
      %p288 = por %p286, %p287
      %p289 = scmp.le.s32.totalorder 1, %s24
      %p290 = scmp.lt.s32.totalorder %s24, 3
      %p291 = pnand %p289, %p290
      %p292 = pneg %p291
      // Predicated region
      $region9: #{tpu_custom_call.1} parent=5 // pred_check
        _
      $region10: #{tpu_custom_call.1} parent=5 // pred_check_branch
        %294 = sbr.rel (%p291) target = $region12
      $region11: #{tpu_custom_call.1} parent=5 // pred_region
        %s295 = ssub.s32 %s24, 1
        // Predicated region
        $region13: #{tpu_custom_call.1} parent=11 // pred_check
          %p296 = pneg %p85
        $region14: #{tpu_custom_call.1} parent=11 // pred_check_branch
          %298 = sbr.rel (%p296) target = $region16
        $region15: #{tpu_custom_call.1} parent=11 // pred_region
          _
        $region16: #{tpu_custom_call.1} parent=11 // pred_fallthru
          _
        // Predicated region
        $region17: #{tpu_custom_call.1} parent=11 // pred_check
          %p299 = pneg %p106
        $region18: #{tpu_custom_call.1} parent=11 // pred_check_branch
          %301 = sbr.rel (%p299) target = $region20
        $region19: #{tpu_custom_call.1} parent=11 // pred_region
          %s303 = ssub.s32 64, 64
          %304 = vsyncadd [#allocation12], %s303
          %s306 = sshll.u32 [#allocation11], 4
          %s307 = int_to_ptr.vmem [resolvable:$true] %s306
          %309 = dma.hbm_to_vmem [thread:$0]  %s2, 64, %s307, [#allocation12]
        $region20: #{tpu_custom_call.1} parent=11 // pred_fallthru
          _
        // Predicated region
        $region21: #{tpu_custom_call.1} parent=11 // pred_check
          %p310 = pneg %p127
        $region22: #{tpu_custom_call.1} parent=11 // pred_check_branch
          %312 = sbr.rel (%p310) target = $region24
        $region23: #{tpu_custom_call.1} parent=11 // pred_region
          _
        $region24: #{tpu_custom_call.1} parent=11 // pred_fallthru
          _
        // Predicated region
        $region25: #{tpu_custom_call.1} parent=11 // pred_check
          %p313 = pneg %p148
        $region26: #{tpu_custom_call.1} parent=11 // pred_check_branch
          %315 = sbr.rel (%p313) target = $region28
        $region27: #{tpu_custom_call.1} parent=11 // pred_region
          _
        $region28: #{tpu_custom_call.1} parent=11 // pred_fallthru
          _
        // Predicated region
        $region29: #{tpu_custom_call.1} parent=11 // pred_check
          %p316 = pneg %p169
        $region30: #{tpu_custom_call.1} parent=11 // pred_check_branch
          %318 = sbr.rel (%p316) target = $region32
        $region31: #{tpu_custom_call.1} parent=11 // pred_region
          _
        $region32: #{tpu_custom_call.1} parent=11 // pred_fallthru
          _
        // Predicated region
        $region33: #{tpu_custom_call.1} parent=11 // pred_check
          %p319 = pneg %p190
        $region34: #{tpu_custom_call.1} parent=11 // pred_check_branch
          %321 = sbr.rel (%p319) target = $region36
        $region35: #{tpu_custom_call.1} parent=11 // pred_region
          _
        $region36: #{tpu_custom_call.1} parent=11 // pred_fallthru
          _
        // Predicated region
        $region37: #{tpu_custom_call.1} parent=11 // pred_check
          %p322 = pneg %p211
        $region38: #{tpu_custom_call.1} parent=11 // pred_check_branch
          %324 = sbr.rel (%p322) target = $region40
        $region39: #{tpu_custom_call.1} parent=11 // pred_region
          %s326 = ssub.s32 256, 256
          %327 = vsyncadd [#allocation12], %s326
          %s328 = sshll.u32 [#allocation13], 4
          %s329 = int_to_ptr.vmem [resolvable:$true] %s328
          %334 = dma.hbm_to_vmem [thread:$0]  %s7, 256, %s329, [#allocation12], 128, 128, 8
        $region40: #{tpu_custom_call.1} parent=11 // pred_fallthru
          _
        // Predicated region
        $region41: #{tpu_custom_call.1} parent=11 // pred_check
          %p335 = pneg %p232
        $region42: #{tpu_custom_call.1} parent=11 // pred_check_branch
          %337 = sbr.rel (%p335) target = $region44
        $region43: #{tpu_custom_call.1} parent=11 // pred_region
          %s339 = ssub.s32 16, 16
          %340 = vsyncadd [#allocation15], %s339
          %s342 = sshll.u32 [#allocation14], 4
          %s343 = int_to_ptr.vmem [resolvable:$true] %s342
          %345 = dma.hbm_to_vmem [thread:$0]  %s8, 16, %s343, [#allocation15]
        $region44: #{tpu_custom_call.1} parent=11 // pred_fallthru
          _
        // Predicated region
        $region45: #{tpu_custom_call.1} parent=11 // pred_check
          %p346 = pneg %p253
        $region46: #{tpu_custom_call.1} parent=11 // pred_check_branch
          %348 = sbr.rel (%p346) target = $region48
        $region47: #{tpu_custom_call.1} parent=11 // pred_region
          _
        $region48: #{tpu_custom_call.1} parent=11 // pred_fallthru
          _
      $region12: #{tpu_custom_call.1} parent=5 // pred_fallthru
        _
      %p349 = scmp.lt.s32.totalorder %s24, 2
      // Predicated region
      $region49: #{tpu_custom_call.1} parent=5 // pred_check
        %p350 = pneg %p349
      $region50: #{tpu_custom_call.1} parent=5 // pred_check_branch
        %352 = sbr.rel (%p350) target = $region52
      $region51: #{tpu_custom_call.1} parent=5 // pred_region
        // Predicated region
        $region53: #{tpu_custom_call.1} parent=51 // pred_check
          %p353 = pneg %p58
        $region54: #{tpu_custom_call.1} parent=51 // pred_check_branch
          %355 = sbr.rel (%p353) target = $region56
        $region55: #{tpu_custom_call.1} parent=51 // pred_region
          %s356 = sand.u32 %s48, 1
          %s357 = scalar_lea.sflag [#allocation9], %s356
          %s358 = sand.u32 %s48, 1
          %s359 = smul.addr %s358, 8
          %s360 = scalar_lea.vmem [#allocation8], %s359
          %s362 = ssub.s32 128, 128
          %363 = vsyncadd %s357, %s362
          %s364 = sadd.s32 %s32, %s31
          %s365 = smul.addr %s364, 128
          %s366 = scalar_lea.hbm %s0, %s365
          %s368 = sshll.u32 %s360, 4
          %s369 = int_to_ptr.vmem [resolvable:$true] %s368
          %371 = dma.hbm_to_vmem [thread:$0]  %s366, 128, %s369, %s357
        $region56: #{tpu_custom_call.1} parent=51 // pred_fallthru
          _
      $region52: #{tpu_custom_call.1} parent=5 // pred_fallthru
        _
      %p372 = scmp.le.s32.totalorder 1, %s24
      %p373 = scmp.lt.s32.totalorder %s24, 3
      %p374 = pnand %p372, %p373
      %p375 = pneg %p374
      // Predicated region
      $region57: #{tpu_custom_call.1} parent=5 // pred_check
        _
      $region58: #{tpu_custom_call.1} parent=5 // pred_check_branch
        %377 = sbr.rel (%p374) target = $region60
      $region59: #{tpu_custom_call.1} parent=5 // pred_region
        %s378 = ssub.s32 %s24, 1
        %s379 = sand.u32 %s51, 1
        %s380 = scalar_lea.sflag [#allocation9], %s379
        %s381 = sand.u32 %s51, 1
        %s382 = smul.addr %s381, 8
        %s383 = scalar_lea.vmem [#allocation8], %s382
        // Predicated region
        $region61: #{tpu_custom_call.1} parent=59 // pred_check
          %p384 = pneg %p64
        $region62: #{tpu_custom_call.1} parent=59 // pred_check_branch
          %386 = sbr.rel (%p384) target = $region64
        $region63: #{tpu_custom_call.1} parent=59 // pred_region
          %387 = dma.done %s380, 128
        $region64: #{tpu_custom_call.1} parent=59 // pred_fallthru
          _
        // Predicated region
        $region65: #{tpu_custom_call.1} parent=59 // pred_check
          %p388 = pneg %p106
        $region66: #{tpu_custom_call.1} parent=59 // pred_check_branch
          %390 = sbr.rel (%p388) target = $region68
        $region67: #{tpu_custom_call.1} parent=59 // pred_region
          %391 = dma.done [#allocation12], 64
        $region68: #{tpu_custom_call.1} parent=59 // pred_fallthru
          _
        // Predicated region
        $region69: #{tpu_custom_call.1} parent=59 // pred_check
          %p392 = pneg %p211
        $region70: #{tpu_custom_call.1} parent=59 // pred_check_branch
          %394 = sbr.rel (%p392) target = $region72
        $region71: #{tpu_custom_call.1} parent=59 // pred_region
          %395 = dma.done [#allocation12], 256
        $region72: #{tpu_custom_call.1} parent=59 // pred_fallthru
          _
        // Predicated region
        $region73: #{tpu_custom_call.1} parent=59 // pred_check
          %p396 = pneg %p232
        $region74: #{tpu_custom_call.1} parent=59 // pred_check_branch
          %398 = sbr.rel (%p396) target = $region76
        $region75: #{tpu_custom_call.1} parent=59 // pred_region
          %399 = dma.done [#allocation15], 16
        $region76: #{tpu_custom_call.1} parent=59 // pred_fallthru
          _
        %s400 = sand.u32 %s51, 1
        %s401 = scalar_lea.sflag [#allocation9], %s400
        %s402 = sand.u32 %s51, 1
        %s403 = smul.addr %s402, 8
        %s404 = scalar_lea.vmem [#allocation8], %s403
        %p405 = pneg %p64
        %p406 = pneg %p61
        %p407 = pneg %p85
        %p408 = pneg %p82
        %p409 = pneg %p106
        %p410 = pneg %p103
        %p411 = pneg %p127
        %p412 = pneg %p124
        %p413 = pneg %p148
        %p414 = pneg %p145
        %p415 = pneg %p169
        %p416 = pneg %p166
        %p417 = pneg %p190
        %p418 = pneg %p187
        %p419 = pneg %p211
        %p420 = pneg %p208
        %p421 = pneg %p232
        %p422 = pneg %p229
        %p423 = pneg %p253
        %p424 = pneg %p250
        %p425 = pneg %p281
        %p426 = pneg %p278
        %s427 = sand.u32 %s268, 1
        %s428 = scalar_lea.sflag [#allocation10], %s427
        %s429 = sand.u32 %s268, 1
        %s430 = smul.addr %s429, 8
        %s431 = scalar_lea.vmem [#allocation16], %s430
        %p432 = scmp.eq.s32.totalorder %s34, 0
        // Predicated region
        $region77: #{tpu_custom_call.1} parent=59 // pred_check
          %p433 = pneg %p432
        $region78: #{tpu_custom_call.1} parent=59 // pred_check_branch
          %435 = sbr.rel (%p433) target = $region80
        $region79: #{tpu_custom_call.1} parent=59 // pred_region
          %vm436 = vcmask 523264
          %437 = vst.msk [vmem:[#allocation3] sm:$0xff] %vm436, 0.0
          %438 = vst.msk [vmem:[#allocation3 + $0x8] sm:$0xff] %vm436, 0.0
          %439 = vst.msk [vmem:[#allocation2] sm:$0xff] %vm436, 0.0
        $region80: #{tpu_custom_call.1} parent=59 // pred_fallthru
          _
        %v440 = vld [vmem:[%s383] sm:$0xff]
        %v441 = vld [vmem:[%s1] sm:$0xff]
        %v442 = vld [vmem:[%s1 + $0x8] sm:$0xff]
        %v443 = vld [vmem:[%s1 + $0x10] sm:$0xff]
        %v444 = vld [vmem:[%s1 + $0x18] sm:$0xff]
        %vm445 = vcmask 261120
        %v447 = vsel %vm445, %v440, 0
        %449 = vmatprep.subr.mxu0 0.0
        %450 = vmatpush1.msra.mxu0 %v441
        %451 = vmatprep.subr.mxu0 0.0
        %452 = vmatpush1.msra.mxu0 %v442
        %453 = vmatprep.subr.mxu0 0.0
        %454 = vmatpush1.msra.mxu0 %v443
        %455 = vmatprep.subr.mxu0 0.0
        %456 = vmatpush1.msra.mxu0 %v444
        %457 = vmatprep.subr.mxu0 0.0
        %458 = vmatpush1.msra.mxu0 0.0
        %459 = vmatprep.subr.mxu0 0.0
        %460 = vmatpush1.msra.mxu0 0.0
        %461 = vmatprep.subr.mxu0 0.0
        %462 = vmatpush1.msra.mxu0 0.0
        %463 = vmatprep.subr.mxu0 0.0
        %464 = vmatpush1.msra.mxu0 0.0
        %465 = vmatprep.subr.mxu0 0.0
        %466 = vmatpush1.msra.mxu0 0.0
        %467 = vmatprep.subr.mxu0 0.0
        %468 = vmatpush1.msra.mxu0 0.0
        %469 = vmatprep.subr.mxu0 0.0
        %470 = vmatpush1.msra.mxu0 0.0
        %471 = vmatprep.subr.mxu0 0.0
        %472 = vmatpush1.msra.mxu0 0.0
        %473 = vmatprep.subr.mxu0 0.0
        %474 = vmatpush1.msra.mxu0 0.0
        %475 = vmatprep.subr.mxu0 0.0
        %476 = vmatpush1.msra.mxu0 0.0
        %477 = vmatprep.subr.mxu0 0.0
        %478 = vmatpush1.msra.mxu0 0.0
        %479 = vmatprep.subr.mxu0 0.0
        %480 = vmatpush1.msra.mxu0 0.0
        %481 = vmatprep.subr.mxu0 0.0
        %482 = vmatpush1.msra.mxu0 0.0
        %483 = vmatprep.subr.mxu0 0.0
        %484 = vmatpush1.msra.mxu0 0.0
        %485 = vmatprep.subr.mxu0 0.0
        %486 = vmatpush1.msra.mxu0 0.0
        %487 = vmatprep.subr.mxu0 0.0
        %488 = vmatpush1.msra.mxu0 0.0
        %489 = vmatprep.subr.mxu0 0.0
        %490 = vmatpush1.msra.mxu0 0.0
        %491 = vmatprep.subr.mxu0 0.0
        %492 = vmatpush1.msra.mxu0 0.0
        %493 = vmatprep.subr.mxu0 0.0
        %494 = vmatpush1.msra.mxu0 0.0
        %495 = vmatprep.subr.mxu0 0.0
        %496 = vmatpush1.msra.mxu0 0.0
        %497 = vmatprep.subr.mxu0 0.0
        %498 = vmatpush1.msra.mxu0 0.0
        %499 = vmatprep.subr.mxu0 0.0
        %500 = vmatpush1.msra.mxu0 0.0
        %501 = vmatprep.subr.mxu0 0.0
        %502 = vmatpush1.msra.mxu0 0.0
        %503 = vmatprep.subr.mxu0 0.0
        %504 = vmatpush1.msra.mxu0 0.0
        %505 = vmatprep.subr.mxu0 0.0
        %506 = vmatpush1.msra.mxu0 0.0
        %507 = vmatprep.subr.mxu0 0.0
        %508 = vmatpush1.msra.mxu0 0.0
        %509 = vmatprep.subr.mxu0 0.0
        %510 = vmatpush1.msra.mxu0 0.0
        %511 = vmatprep.subr.mxu0 0.0
        %512 = vmatpush1.msra.mxu0 0.0
        %513 = vmatprep.mubr.f32.mxu0 0.0
        %514 = vmatmul.mubr.f32.gmra.mrb[0].mxu0 %v447
        %v515 = vpop.f32.mrb[0].mxu0
        %v516 = vadd.f32 0.0, %v515
        %v517 = vpop.f32.mrb[0].mxu0
        %518 = vdwg.mxu0
        %vm519 = vcmask 523264
        %520 = vst.msk [vmem:[#allocation2 + $0x8] sm:$0xff] %vm519, %v516
        %v521 = vld [vmem:[#allocation2] sm:$0xff]
        %v522 = vld [vmem:[#allocation2 + $0x8] sm:$0xff]
        %523 = vst.msk [vmem:[#allocation2] sm:$0xff] %vm519, %v516
        %v524 = vld [vmem:[#allocation11] sm:$0x1]
        %v525 = vlaneseq
        %v526 = vshrl.u32 %v525, 7
        %v527 = vsub.s32 0, %v526
        %v528 = vrot.slane %v524, %v527
        %v529 = vmul.f32 %v521, %v528
        %v530 = vmul.f32 %v522, %v528
        %v531 = vld [vmem:[#allocation11 + $0x1] sm:$0x1]
        %v532 = vlaneseq
        %v533 = vshrl.u32 %v532, 7
        %v534 = vsub.s32 0, %v533
        %v535 = vrot.slane %v531, %v534
        %v536 = vmul.f32 %v521, %v535
        %v537 = vmul.f32 %v522, %v535
        %vm540 = vcmask 1046528
        %v541 = vrot.slane %v536, 1
        %v542 = vrot.slane %v537, 1
        %v543 = vsel %vm540, %v541, %v542
        %v546 = vadd.f32 %v529, %v543
        %v547 = vadd.f32 %v530, %v542
        %v548 = vld [vmem:[#allocation11 + $0x2] sm:$0x1]
        %v549 = vlaneseq
        %v550 = vshrl.u32 %v549, 7
        %v551 = vsub.s32 0, %v550
        %v552 = vrot.slane %v548, %v551
        %v553 = vmul.f32 %v521, %v552
        %v554 = vmul.f32 %v522, %v552
        %vm557 = vcmask 1045504
        %v558 = vrot.slane %v553, 2
        %v559 = vrot.slane %v554, 2
        %v560 = vsel %vm557, %v558, %v559
        %v563 = vadd.f32 %v546, %v560
        %v564 = vadd.f32 %v547, %v559
        %v565 = vld [vmem:[#allocation11 + $0x3] sm:$0x1]
        %v566 = vlaneseq
        %v567 = vshrl.u32 %v566, 7
        %v568 = vsub.s32 0, %v567
        %v569 = vrot.slane %v565, %v568
        %v570 = vmul.f32 %v522, %v569
        %v572 = vrot.slane %v570, 3
        %v574 = vadd.f32 %v563, %v572
        %v575 = vadd.f32 %v564, %v572
        %v576 = vld [vmem:[%s3] sm:$0x1]
        %v578 = vlaneseq
        %v579 = vshrl.u32 %v578, 7
        %v580 = vsub.s32 0, %v579
        %v581 = vrot.slane %v576, %v580
        %v583 = vadd.f32 %v574, %v581
        %v584 = vadd.f32 %v575, %v581
        %v585 = vsub.f32 0.0, %v583
        %v586 = vsub.f32 0.0, %v584
        %v587 = vmul.f32 %v585, 1.442695
        %v588 = vpow.pop %v587
        %v589 = vmul.f32 %v586, 1.442695
        %v590 = vpow.pop %v589
        %v591 = vadd.f32 %v588, 1.0
        %v592 = vadd.f32 %v590, 1.0
        %v593 = vrcp.pop %v591
        %v594 = vmul.f32 1.0, %v593
        %v595 = vrcp.pop %v592
        %v596 = vmul.f32 1.0, %v595
        %v597 = vmul.f32 %v583, %v594
        %v598 = vmul.f32 %v584, %v596
        %v599 = vld [vmem:[%s4] sm:$0xff]
        %v600 = vld [vmem:[%s4 + $0x8] sm:$0xff]
        %v601 = vld [vmem:[%s4 + $0x10] sm:$0xff]
        %v602 = vld [vmem:[%s4 + $0x18] sm:$0xff]
        %v603 = vld [vmem:[%s4 + $0x20] sm:$0xff]
        %v604 = vld [vmem:[%s4 + $0x28] sm:$0xff]
        %v605 = vld [vmem:[%s4 + $0x30] sm:$0xff]
        %v606 = vld [vmem:[%s4 + $0x38] sm:$0xff]
        %v607 = vld [vmem:[%s4 + $0x40] sm:$0xff]
        %v608 = vld [vmem:[%s4 + $0x48] sm:$0xff]
        %v609 = vld [vmem:[%s4 + $0x50] sm:$0xff]
        %v610 = vld [vmem:[%s4 + $0x58] sm:$0xff]
        %v611 = vld [vmem:[%s4 + $0x60] sm:$0xff]
        %v612 = vld [vmem:[%s4 + $0x68] sm:$0xff]
        %v613 = vld [vmem:[%s4 + $0x70] sm:$0xff]
        %v614 = vld [vmem:[%s4 + $0x78] sm:$0xff]
        %v615 = vld [vmem:[%s4 + $0x80] sm:$0xff]
        %v616 = vld [vmem:[%s4 + $0x88] sm:$0xff]
        %v617 = vld [vmem:[%s4 + $0x90] sm:$0xff]
        %v618 = vld [vmem:[%s4 + $0x98] sm:$0xff]
        %v619 = vld [vmem:[%s4 + $0xa0] sm:$0xff]
        %v620 = vld [vmem:[%s4 + $0xa8] sm:$0xff]
        %v621 = vld [vmem:[%s4 + $0xb0] sm:$0xff]
        %v622 = vld [vmem:[%s4 + $0xb8] sm:$0xff]
        %vm625 = vcmask 1042432
        %v626 = vrot.slane %v597, 5
        %v627 = vrot.slane %v598, 5
        %v628 = vsel %vm625, %v626, %v627
        %v629 = vsel %vm519, %v628, 0
        %631 = vmatprep.subr.mxu0 %v600
        %632 = vmatpush1.msra.mxu0 %v599
        %633 = vmatprep.subr.mxu0 %v603
        %634 = vmatpush1.msra.mxu0 %v602
        %635 = vmatprep.subr.mxu0 %v606
        %636 = vmatpush1.msra.mxu0 %v605
        %637 = vmatprep.subr.mxu0 %v609
        %638 = vmatpush1.msra.mxu0 %v608
        %639 = vmatprep.subr.mxu0 %v612
        %640 = vmatpush1.msra.mxu0 %v611
        %641 = vmatprep.subr.mxu0 %v615
        %642 = vmatpush1.msra.mxu0 %v614
        %643 = vmatprep.subr.mxu0 %v618
        %644 = vmatpush1.msra.mxu0 %v617
        %645 = vmatprep.subr.mxu0 %v621
        %646 = vmatpush1.msra.mxu0 %v620
        %647 = vmatprep.subr.mxu0 0.0
        %648 = vmatpush1.msra.mxu0 0.0
        %649 = vmatprep.subr.mxu0 0.0
        %650 = vmatpush1.msra.mxu0 0.0
        %651 = vmatprep.subr.mxu0 0.0
        %652 = vmatpush1.msra.mxu0 0.0
        %653 = vmatprep.subr.mxu0 0.0
        %654 = vmatpush1.msra.mxu0 0.0
        %655 = vmatprep.subr.mxu0 0.0
        %656 = vmatpush1.msra.mxu0 0.0
        %657 = vmatprep.subr.mxu0 0.0
        %658 = vmatpush1.msra.mxu0 0.0
        %659 = vmatprep.subr.mxu0 0.0
        %660 = vmatpush1.msra.mxu0 0.0
        %661 = vmatprep.subr.mxu0 0.0
        %662 = vmatpush1.msra.mxu0 0.0
        %663 = vmatprep.subr.mxu0 0.0
        %664 = vmatpush1.msra.mxu0 0.0
        %665 = vmatprep.subr.mxu0 0.0
        %666 = vmatpush1.msra.mxu0 0.0
        %667 = vmatprep.subr.mxu0 0.0
        %668 = vmatpush1.msra.mxu0 0.0
        %669 = vmatprep.subr.mxu0 0.0
        %670 = vmatpush1.msra.mxu0 0.0
        %671 = vmatprep.subr.mxu0 0.0
        %672 = vmatpush1.msra.mxu0 0.0
        %673 = vmatprep.subr.mxu0 0.0
        %674 = vmatpush1.msra.mxu0 0.0
        %675 = vmatprep.subr.mxu0 0.0
        %676 = vmatpush1.msra.mxu0 0.0
        %677 = vmatprep.subr.mxu0 0.0
        %678 = vmatpush1.msra.mxu0 0.0
        %679 = vmatprep.subr.mxu0 0.0
        %680 = vmatpush1.msra.mxu0 0.0
        %681 = vmatprep.subr.mxu0 0.0
        %682 = vmatpush1.msra.mxu0 0.0
        %683 = vmatprep.subr.mxu0 0.0
        %684 = vmatpush1.msra.mxu0 0.0
        %685 = vmatprep.subr.mxu0 0.0
        %686 = vmatpush1.msra.mxu0 0.0
        %687 = vmatprep.subr.mxu0 0.0
        %688 = vmatpush1.msra.mxu0 0.0
        %689 = vmatprep.subr.mxu0 0.0
        %690 = vmatpush1.msra.mxu0 0.0
        %691 = vmatprep.subr.mxu0 0.0
        %692 = vmatpush1.msra.mxu0 0.0
        %693 = vmatprep.subr.mxu0 0.0
        %694 = vmatpush1.msra.mxu0 0.0
        %695 = vmatprep.mubr.f32.mxu0 0.0
        %696 = vmatmul.mubr.f32.gmra.mrb[0].mxu0 %v629
        %v697 = vpop.f32.mrb[0].mxu0
        %v698 = vadd.f32 0.0, %v697
        %v699 = vpop.f32.mrb[0].mxu0
        %v700 = vadd.f32 0.0, %v699
        %701 = vdwg.mxu0
        %702 = vmatprep.subr.mxu0 0.0
        %703 = vmatpush1.msra.mxu0 %v601
        %704 = vmatprep.subr.mxu0 0.0
        %705 = vmatpush1.msra.mxu0 %v604
        %706 = vmatprep.subr.mxu0 0.0
        %707 = vmatpush1.msra.mxu0 %v607
        %708 = vmatprep.subr.mxu0 0.0
        %709 = vmatpush1.msra.mxu0 %v610
        %710 = vmatprep.subr.mxu0 0.0
        %711 = vmatpush1.msra.mxu0 %v613
        %712 = vmatprep.subr.mxu0 0.0
        %713 = vmatpush1.msra.mxu0 %v616
        %714 = vmatprep.subr.mxu0 0.0
        %715 = vmatpush1.msra.mxu0 %v619
        %716 = vmatprep.subr.mxu0 0.0
        %717 = vmatpush1.msra.mxu0 %v622
        %718 = vmatprep.subr.mxu0 0.0
        %719 = vmatpush1.msra.mxu0 0.0
        %720 = vmatprep.subr.mxu0 0.0
        %721 = vmatpush1.msra.mxu0 0.0
        %722 = vmatprep.subr.mxu0 0.0
        %723 = vmatpush1.msra.mxu0 0.0
        %724 = vmatprep.subr.mxu0 0.0
        %725 = vmatpush1.msra.mxu0 0.0
        %726 = vmatprep.subr.mxu0 0.0
        %727 = vmatpush1.msra.mxu0 0.0
        %728 = vmatprep.subr.mxu0 0.0
        %729 = vmatpush1.msra.mxu0 0.0
        %730 = vmatprep.subr.mxu0 0.0
        %731 = vmatpush1.msra.mxu0 0.0
        %732 = vmatprep.subr.mxu0 0.0
        %733 = vmatpush1.msra.mxu0 0.0
        %734 = vmatprep.subr.mxu0 0.0
        %735 = vmatpush1.msra.mxu0 0.0
        %736 = vmatprep.subr.mxu0 0.0
        %737 = vmatpush1.msra.mxu0 0.0
        %738 = vmatprep.subr.mxu0 0.0
        %739 = vmatpush1.msra.mxu0 0.0
        %740 = vmatprep.subr.mxu0 0.0
        %741 = vmatpush1.msra.mxu0 0.0
        %742 = vmatprep.subr.mxu0 0.0
        %743 = vmatpush1.msra.mxu0 0.0
        %744 = vmatprep.subr.mxu0 0.0
        %745 = vmatpush1.msra.mxu0 0.0
        %746 = vmatprep.subr.mxu0 0.0
        %747 = vmatpush1.msra.mxu0 0.0
        %748 = vmatprep.subr.mxu0 0.0
        %749 = vmatpush1.msra.mxu0 0.0
        %750 = vmatprep.subr.mxu0 0.0
        %751 = vmatpush1.msra.mxu0 0.0
        %752 = vmatprep.subr.mxu0 0.0
        %753 = vmatpush1.msra.mxu0 0.0
        %754 = vmatprep.subr.mxu0 0.0
        %755 = vmatpush1.msra.mxu0 0.0
        %756 = vmatprep.subr.mxu0 0.0
        %757 = vmatpush1.msra.mxu0 0.0
        %758 = vmatprep.subr.mxu0 0.0
        %759 = vmatpush1.msra.mxu0 0.0
        %760 = vmatprep.subr.mxu0 0.0
        %761 = vmatpush1.msra.mxu0 0.0
        %762 = vmatprep.subr.mxu0 0.0
        %763 = vmatpush1.msra.mxu0 0.0
        %764 = vmatprep.subr.mxu0 0.0
        %765 = vmatpush1.msra.mxu0 0.0
        %766 = vmatprep.mubr.f32.mxu0 0.0
        %767 = vmatmul.mubr.f32.gmra.mrb[0].mxu0 %v629
        %v768 = vpop.f32.mrb[0].mxu0
        %v769 = vadd.f32 0.0, %v768
        %v770 = vpop.f32.mrb[0].mxu0
        %771 = vdwg.mxu0
        %v772 = vld [vmem:[%s5] sm:$0xff]
        %v773 = vld [vmem:[%s5 + $0x8] sm:$0xff]
        %v774 = vld [vmem:[%s5 + $0x10] sm:$0xff]
        %v775 = vld [vmem:[%s5 + $0x18] sm:$0xff]
        %v776 = vld [vmem:[%s5 + $0x20] sm:$0xff]
        %v777 = vld [vmem:[%s5 + $0x28] sm:$0xff]
        %v778 = vld [vmem:[%s5 + $0x30] sm:$0xff]
        %v779 = vld [vmem:[%s5 + $0x38] sm:$0xff]
        %v780 = vld [vmem:[%s5 + $0x40] sm:$0xff]
        %v781 = vld [vmem:[%s5 + $0x48] sm:$0xff]
        %v782 = vld [vmem:[%s5 + $0x50] sm:$0xff]
        %v783 = vld [vmem:[%s5 + $0x58] sm:$0xff]
        %v784 = vld [vmem:[%s5 + $0x60] sm:$0xff]
        %v785 = vld [vmem:[%s5 + $0x68] sm:$0xff]
        %v786 = vld [vmem:[%s5 + $0x70] sm:$0xff]
        %v787 = vld [vmem:[%s5 + $0x78] sm:$0xff]
        %v788 = vld [vmem:[%s6] sm:$0x1]
        %v790 = vlaneseq
        %v791 = vshrl.u32 %v790, 7
        %v792 = vsub.s32 0, %v791
        %v793 = vrot.slane %v788, %v792
        %795 = vmatprep.subr.mxu0 0.0
        %796 = vmatpush1.msra.mxu0 %v772
        %797 = vmatprep.subr.mxu0 0.0
        %798 = vmatpush1.msra.mxu0 %v773
        %799 = vmatprep.subr.mxu0 0.0
        %800 = vmatpush1.msra.mxu0 %v774
        %801 = vmatprep.subr.mxu0 0.0
        %802 = vmatpush1.msra.mxu0 %v775
        %803 = vmatprep.subr.mxu0 0.0
        %804 = vmatpush1.msra.mxu0 %v776
        %805 = vmatprep.subr.mxu0 0.0
        %806 = vmatpush1.msra.mxu0 %v777
        %807 = vmatprep.subr.mxu0 0.0
        %808 = vmatpush1.msra.mxu0 %v778
        %809 = vmatprep.subr.mxu0 0.0
        %810 = vmatpush1.msra.mxu0 %v779
        %811 = vmatprep.subr.mxu0 0.0
        %812 = vmatpush1.msra.mxu0 %v780
        %813 = vmatprep.subr.mxu0 0.0
        %814 = vmatpush1.msra.mxu0 %v781
        %815 = vmatprep.subr.mxu0 0.0
        %816 = vmatpush1.msra.mxu0 %v782
        %817 = vmatprep.subr.mxu0 0.0
        %818 = vmatpush1.msra.mxu0 %v783
        %819 = vmatprep.subr.mxu0 0.0
        %820 = vmatpush1.msra.mxu0 %v784
        %821 = vmatprep.subr.mxu0 0.0
        %822 = vmatpush1.msra.mxu0 %v785
        %823 = vmatprep.subr.mxu0 0.0
        %824 = vmatpush1.msra.mxu0 %v786
        %825 = vmatprep.subr.mxu0 0.0
        %826 = vmatpush1.msra.mxu0 %v787
        %827 = vmatprep.subr.mxu0 0.0
        %828 = vmatpush1.msra.mxu0 0.0
        %829 = vmatprep.subr.mxu0 0.0
        %830 = vmatpush1.msra.mxu0 0.0
        %831 = vmatprep.subr.mxu0 0.0
        %832 = vmatpush1.msra.mxu0 0.0
        %833 = vmatprep.subr.mxu0 0.0
        %834 = vmatpush1.msra.mxu0 0.0
        %835 = vmatprep.subr.mxu0 0.0
        %836 = vmatpush1.msra.mxu0 0.0
        %837 = vmatprep.subr.mxu0 0.0
        %838 = vmatpush1.msra.mxu0 0.0
        %839 = vmatprep.subr.mxu0 0.0
        %840 = vmatpush1.msra.mxu0 0.0
        %841 = vmatprep.subr.mxu0 0.0
        %842 = vmatpush1.msra.mxu0 0.0
        %843 = vmatprep.subr.mxu0 0.0
        %844 = vmatpush1.msra.mxu0 0.0
        %845 = vmatprep.subr.mxu0 0.0
        %846 = vmatpush1.msra.mxu0 0.0
        %847 = vmatprep.subr.mxu0 0.0
        %848 = vmatpush1.msra.mxu0 0.0
        %849 = vmatprep.subr.mxu0 0.0
        %850 = vmatpush1.msra.mxu0 0.0
        %851 = vmatprep.subr.mxu0 0.0
        %852 = vmatpush1.msra.mxu0 0.0
        %853 = vmatprep.subr.mxu0 0.0
        %854 = vmatpush1.msra.mxu0 0.0
        %855 = vmatprep.subr.mxu0 0.0
        %856 = vmatpush1.msra.mxu0 0.0
        %857 = vmatprep.subr.mxu0 0.0
        %858 = vmatpush1.msra.mxu0 0.0
        %859 = vmatprep.mubr.f32.mxu0 0.0
        %860 = vmatmul.mubr.f32.gmra.mrb[0].mxu0 %v698
        %v861 = vpop.f32.mrb[0].mxu0
        %v862 = vadd.f32 %v793, %v861
        %v863 = vpop.f32.mrb[0].mxu0
        %864 = vdwg.mxu0
        %vm865 = vcmp.gt.f32.partialorder %v862, 20.0
        %v866 = vmul.f32 %v862, 1.442695
        %v867 = vpow.pop %v866
        %v868 = vadd.f32 %v867, 1.0
        %v869 = vlog2.pop %v868
        %v870 = vmul.f32 %v869, 0.6931472
        %v871 = vmul.f32 -0.5, %v867
        %v872 = vadd.f32 %v871, 1.0
        %v873 = vmul.f32 %v872, %v867
        %v874 = vand.u32 2147483647, %v867
        %vm875 = vcmp.lt.f32.partialorder %v874, 0.0004427343
        %v876 = vsel %vm875, %v873, %v870
        %v877 = vsel %vm865, %v862, %v876
        %878 = vst.msk [vmem:[#allocation4] sm:$0xff] %vm519, %v877
        %v880 = vmul.f32 %v877, %v628
        %881 = vst.msk [vmem:[#allocation5] sm:$0xff] %vm519, %v880
        %882 = vst [vmem:[#allocation6] sm:$0xff] %v700
        %883 = vst [vmem:[#allocation7] sm:$0xff] %v769
        %v884 = vld [vmem:[#allocation13] sm:$0xff]
        %v885 = vld [vmem:[#allocation13 + $0x8] sm:$0xff]
        %v886 = vld [vmem:[#allocation3] sm:$0xff]
        %v887 = vld [vmem:[#allocation3 + $0x8] sm:$0xff]
        %v888 = vld [vmem:[#allocation4] sm:$0xff]
        %v889 = vld [vmem:[#allocation5] sm:$0xff]
        %v890 = vld [vmem:[#allocation6] sm:$0xff]
        %891 = vxpose.xlu0.b32.start [1/16] %v890, 128
        %892 = vxpose.xlu0.b32.cont [2/16] 0.0, 128
        %893 = vxpose.xlu0.b32.cont [3/16] 0.0, 128
        %894 = vxpose.xlu0.b32.cont [4/16] 0.0, 128
        %895 = vxpose.xlu0.b32.cont [5/16] 0.0, 128
        %896 = vxpose.xlu0.b32.cont [6/16] 0.0, 128
        %897 = vxpose.xlu0.b32.cont [7/16] 0.0, 128
        %898 = vxpose.xlu0.b32.cont [8/16] 0.0, 128
        %899 = vxpose.xlu0.b32.cont [9/16] 0.0, 128
        %900 = vxpose.xlu0.b32.cont [10/16] 0.0, 128
        %901 = vxpose.xlu0.b32.cont [11/16] 0.0, 128
        %902 = vxpose.xlu0.b32.cont [12/16] 0.0, 128
        %903 = vxpose.xlu0.b32.cont [13/16] 0.0, 128
        %904 = vxpose.xlu0.b32.cont [14/16] 0.0, 128
        %905 = vxpose.xlu0.b32.cont [15/16] 0.0, 128
        %906 = vxpose.xlu0.b32.end [16/16] 0.0, 128
        %v907 = vpop.trf.xlu0
        %v908 = vpop.trf.xlu0
        %v909 = vpop.trf.xlu0
        %v910 = vpop.trf.xlu0
        %v911 = vpop.trf.xlu0
        %v912 = vpop.trf.xlu0
        %v913 = vpop.trf.xlu0
        %v914 = vpop.trf.xlu0
        %v915 = vpop.trf.xlu0
        %v916 = vpop.trf.xlu0
        %v917 = vpop.trf.xlu0
        %v918 = vpop.trf.xlu0
        %v919 = vpop.trf.xlu0
        %v920 = vpop.trf.xlu0
        %v921 = vpop.trf.xlu0
        %v922 = vpop.trf.xlu0
        %v923 = vld [vmem:[#allocation7] sm:$0xff]
        %924 = vxpose.xlu0.b32.start [1/16] %v923, 128
        %925 = vxpose.xlu0.b32.cont [2/16] 0.0, 128
        %926 = vxpose.xlu0.b32.cont [3/16] 0.0, 128
        %927 = vxpose.xlu0.b32.cont [4/16] 0.0, 128
        %928 = vxpose.xlu0.b32.cont [5/16] 0.0, 128
        %929 = vxpose.xlu0.b32.cont [6/16] 0.0, 128
        %930 = vxpose.xlu0.b32.cont [7/16] 0.0, 128
        %931 = vxpose.xlu0.b32.cont [8/16] 0.0, 128
        %932 = vxpose.xlu0.b32.cont [9/16] 0.0, 128
        %933 = vxpose.xlu0.b32.cont [10/16] 0.0, 128
        %934 = vxpose.xlu0.b32.cont [11/16] 0.0, 128
        %935 = vxpose.xlu0.b32.cont [12/16] 0.0, 128
        %936 = vxpose.xlu0.b32.cont [13/16] 0.0, 128
        %937 = vxpose.xlu0.b32.cont [14/16] 0.0, 128
        %938 = vxpose.xlu0.b32.cont [15/16] 0.0, 128
        %939 = vxpose.xlu0.b32.end [16/16] 0.0, 128
        %v940 = vpop.trf.xlu0
        %v941 = vpop.trf.xlu0
        %v942 = vpop.trf.xlu0
        %v943 = vpop.trf.xlu0
        %v944 = vpop.trf.xlu0
        %v945 = vpop.trf.xlu0
        %v946 = vpop.trf.xlu0
        %v947 = vpop.trf.xlu0
        %v948 = vpop.trf.xlu0
        %v949 = vpop.trf.xlu0
        %v950 = vpop.trf.xlu0
        %v951 = vpop.trf.xlu0
        %v952 = vpop.trf.xlu0
        %v953 = vpop.trf.xlu0
        %v954 = vpop.trf.xlu0
        %v955 = vpop.trf.xlu0
        %v956 = vlaneseq
        %v957 = vshrl.u32 %v956, 7
        %v958 = vsub.s32 0, %v957
        %v959 = vrot.slane %v888, %v958
        %v960 = vmul.f32 %v959, %v884
        %v961 = vmul.f32 %v959, %v885
        %v962 = vmul.f32 %v960, 1.442695
        %v963 = vpow.pop %v962
        %v964 = vmul.f32 %v961, 1.442695
        %v965 = vpow.pop %v964
        %v966 = vlaneseq
        %v967 = vshrl.u32 %v966, 7
        %v968 = vsub.s32 1, %v967
        %v969 = vrot.slane %v888, %v968
        %v970 = vmul.f32 %v969, %v884
        %v971 = vmul.f32 %v969, %v885
        %v972 = vmul.f32 %v970, 1.442695
        %v973 = vpow.pop %v972
        %v974 = vmul.f32 %v971, 1.442695
        %v975 = vpow.pop %v974
        %v976 = vlaneseq
        %v977 = vshrl.u32 %v976, 7
        %v978 = vsub.s32 2, %v977
        %v979 = vrot.slane %v888, %v978
        %v980 = vmul.f32 %v979, %v884
        %v981 = vmul.f32 %v979, %v885
        %v982 = vmul.f32 %v980, 1.442695
        %v983 = vpow.pop %v982
        %v984 = vmul.f32 %v981, 1.442695
        %v985 = vpow.pop %v984
        %v986 = vlaneseq
        %v987 = vshrl.u32 %v986, 7
        %v988 = vsub.s32 3, %v987
        %v989 = vrot.slane %v888, %v988
        %v990 = vmul.f32 %v989, %v884
        %v991 = vmul.f32 %v989, %v885
        %v992 = vmul.f32 %v990, 1.442695
        %v993 = vpow.pop %v992
        %v994 = vmul.f32 %v991, 1.442695
        %v995 = vpow.pop %v994
        %v996 = vlaneseq
        %v997 = vshrl.u32 %v996, 7
        %v998 = vsub.s32 4, %v997
        %v999 = vrot.slane %v888, %v998
        %v1000 = vmul.f32 %v999, %v884
        %v1001 = vmul.f32 %v999, %v885
        %v1002 = vmul.f32 %v1000, 1.442695
        %v1003 = vpow.pop %v1002
        %v1004 = vmul.f32 %v1001, 1.442695
        %v1005 = vpow.pop %v1004
        %v1006 = vlaneseq
        %v1007 = vshrl.u32 %v1006, 7
        %v1008 = vsub.s32 5, %v1007
        %v1009 = vrot.slane %v888, %v1008
        %v1010 = vmul.f32 %v1009, %v884
        %v1011 = vmul.f32 %v1009, %v885
        %v1012 = vmul.f32 %v1010, 1.442695
        %v1013 = vpow.pop %v1012
        %v1014 = vmul.f32 %v1011, 1.442695
        %v1015 = vpow.pop %v1014
        %v1016 = vlaneseq
        %v1017 = vshrl.u32 %v1016, 7
        %v1018 = vsub.s32 6, %v1017
        %v1019 = vrot.slane %v888, %v1018
        %v1020 = vmul.f32 %v1019, %v884
        %v1021 = vmul.f32 %v1019, %v885
        %v1022 = vmul.f32 %v1020, 1.442695
        %v1023 = vpow.pop %v1022
        %v1024 = vmul.f32 %v1021, 1.442695
        %v1025 = vpow.pop %v1024
        %v1026 = vlaneseq
        %v1027 = vshrl.u32 %v1026, 7
        %v1028 = vsub.s32 7, %v1027
        %v1029 = vrot.slane %v888, %v1028
        %v1030 = vmul.f32 %v1029, %v884
        %v1031 = vmul.f32 %v1029, %v885
        %v1032 = vmul.f32 %v1030, 1.442695
        %v1033 = vpow.pop %v1032
        %v1034 = vmul.f32 %v1031, 1.442695
        %v1035 = vpow.pop %v1034
        %1037 = vset.pattern.permute.xlu0 0
        %1038 = vperm.xlu0 %1037, %v907
        %v1039 = vpop.permute.xlu0 %1038
        %1042 = vset.pattern.permute.xlu0 0
        %1043 = vperm.xlu0 %1042, %v908
        %v1044 = vpop.permute.xlu0 %1043
        %v1046 = vlaneseq
        %v1047 = vshrl.u32 %v1046, 7
        %v1048 = vsub.s32 0, %v1047
        %v1049 = vrot.slane %v889, %v1048
        %v1050 = vmul.f32 %v1039, %v1049
        %v1051 = vmul.f32 %v1044, %v1049
        %1052 = vset.pattern.permute.xlu0 1
        %1053 = vperm.xlu0 %1052, %v907
        %v1054 = vpop.permute.xlu0 %1053
        %1056 = vset.pattern.permute.xlu0 1
        %1057 = vperm.xlu0 %1056, %v908
        %v1058 = vpop.permute.xlu0 %1057
        %v1060 = vlaneseq
        %v1061 = vshrl.u32 %v1060, 7
        %v1062 = vsub.s32 1, %v1061
        %v1063 = vrot.slane %v889, %v1062
        %v1064 = vmul.f32 %v1054, %v1063
        %v1065 = vmul.f32 %v1058, %v1063
        %1066 = vset.pattern.permute.xlu0 2
        %1067 = vperm.xlu0 %1066, %v907
        %v1068 = vpop.permute.xlu0 %1067
        %1070 = vset.pattern.permute.xlu0 2
        %1071 = vperm.xlu0 %1070, %v908
        %v1072 = vpop.permute.xlu0 %1071
        %v1074 = vlaneseq
        %v1075 = vshrl.u32 %v1074, 7
        %v1076 = vsub.s32 2, %v1075
        %v1077 = vrot.slane %v889, %v1076
        %v1078 = vmul.f32 %v1068, %v1077
        %v1079 = vmul.f32 %v1072, %v1077
        %1080 = vset.pattern.permute.xlu0 3
        %1081 = vperm.xlu0 %1080, %v907
        %v1082 = vpop.permute.xlu0 %1081
        %1084 = vset.pattern.permute.xlu0 3
        %1085 = vperm.xlu0 %1084, %v908
        %v1086 = vpop.permute.xlu0 %1085
        %v1088 = vlaneseq
        %v1089 = vshrl.u32 %v1088, 7
        %v1090 = vsub.s32 3, %v1089
        %v1091 = vrot.slane %v889, %v1090
        %v1092 = vmul.f32 %v1082, %v1091
        %v1093 = vmul.f32 %v1086, %v1091
        %1094 = vset.pattern.permute.xlu0 4
        %1095 = vperm.xlu0 %1094, %v907
        %v1096 = vpop.permute.xlu0 %1095
        %1098 = vset.pattern.permute.xlu0 4
        %1099 = vperm.xlu0 %1098, %v908
        %v1100 = vpop.permute.xlu0 %1099
        %v1102 = vlaneseq
        %v1103 = vshrl.u32 %v1102, 7
        %v1104 = vsub.s32 4, %v1103
        %v1105 = vrot.slane %v889, %v1104
        %v1106 = vmul.f32 %v1096, %v1105
        %v1107 = vmul.f32 %v1100, %v1105
        %1108 = vset.pattern.permute.xlu0 5
        %1109 = vperm.xlu0 %1108, %v907
        %v1110 = vpop.permute.xlu0 %1109
        %1112 = vset.pattern.permute.xlu0 5
        %1113 = vperm.xlu0 %1112, %v908
        %v1114 = vpop.permute.xlu0 %1113
        %v1116 = vlaneseq
        %v1117 = vshrl.u32 %v1116, 7
        %v1118 = vsub.s32 5, %v1117
        %v1119 = vrot.slane %v889, %v1118
        %v1120 = vmul.f32 %v1110, %v1119
        %v1121 = vmul.f32 %v1114, %v1119
        %1122 = vset.pattern.permute.xlu0 6
        %1123 = vperm.xlu0 %1122, %v907
        %v1124 = vpop.permute.xlu0 %1123
        %1126 = vset.pattern.permute.xlu0 6
        %1127 = vperm.xlu0 %1126, %v908
        %v1128 = vpop.permute.xlu0 %1127
        %v1130 = vlaneseq
        %v1131 = vshrl.u32 %v1130, 7
        %v1132 = vsub.s32 6, %v1131
        %v1133 = vrot.slane %v889, %v1132
        %v1134 = vmul.f32 %v1124, %v1133
        %v1135 = vmul.f32 %v1128, %v1133
        %1136 = vset.pattern.permute.xlu0 7
        %1137 = vperm.xlu0 %1136, %v907
        %v1138 = vpop.permute.xlu0 %1137
        %1140 = vset.pattern.permute.xlu0 7
        %1141 = vperm.xlu0 %1140, %v908
        %v1142 = vpop.permute.xlu0 %1141
        %v1144 = vlaneseq
        %v1145 = vshrl.u32 %v1144, 7
        %v1146 = vsub.s32 7, %v1145
        %v1147 = vrot.slane %v889, %v1146
        %v1148 = vmul.f32 %v1138, %v1147
        %v1149 = vmul.f32 %v1142, %v1147
        %v1150 = vmul.f32 %v963, %v886
        %v1151 = vmul.f32 %v965, %v887
        %v1152 = vadd.f32 %v1150, %v1050
        %v1153 = vadd.f32 %v1151, %v1051
        %1155 = vset.pattern.permute.xlu0 0
        %1156 = vperm.xlu0 %1155, %v940
        %v1157 = vpop.permute.xlu0 %1156
        %1160 = vset.pattern.permute.xlu0 0
        %1161 = vperm.xlu0 %1160, %v941
        %v1162 = vpop.permute.xlu0 %1161
        %v1164 = vmul.f32 %v1152, %v1157
        %v1165 = vmul.f32 %v1153, %v1162
        %v1166 = vsel %vm519, %v1164, 0.0
        %v1167 = vsel %vm519, %v1165, 0.0
        %v1168 = vadd.f32 %v1166, %v1167
        %v1169 = vrot.slane %v1168, 4
        %v1170 = vadd.f32 %v1168, %v1169
        %v1171 = vrot.slane %v1170, 2
        %v1172 = vadd.f32 %v1170, %v1171
        %v1173 = vrot.slane %v1172, 1
        %v1174 = vadd.f32 %v1172, %v1173
        %v1175 = vmul.f32 %v973, %v1152
        %v1176 = vmul.f32 %v975, %v1153
        %v1177 = vadd.f32 %v1175, %v1064
        %v1178 = vadd.f32 %v1176, %v1065
        %1179 = vset.pattern.permute.xlu0 1
        %1180 = vperm.xlu0 %1179, %v940
        %v1181 = vpop.permute.xlu0 %1180
        %1183 = vset.pattern.permute.xlu0 1
        %1184 = vperm.xlu0 %1183, %v941
        %v1185 = vpop.permute.xlu0 %1184
        %v1187 = vmul.f32 %v1177, %v1181
        %v1188 = vmul.f32 %v1178, %v1185
        %v1189 = vsel %vm519, %v1187, 0.0
        %v1190 = vsel %vm519, %v1188, 0.0
        %v1191 = vadd.f32 %v1189, %v1190
        %v1192 = vrot.slane %v1191, 4
        %v1193 = vadd.f32 %v1191, %v1192
        %v1194 = vrot.slane %v1193, 2
        %v1195 = vadd.f32 %v1193, %v1194
        %v1196 = vrot.slane %v1195, 1
        %v1197 = vadd.f32 %v1195, %v1196
        %v1198 = vmul.f32 %v983, %v1177
        %v1199 = vmul.f32 %v985, %v1178
        %v1200 = vadd.f32 %v1198, %v1078
        %v1201 = vadd.f32 %v1199, %v1079
        %1202 = vset.pattern.permute.xlu0 2
        %1203 = vperm.xlu0 %1202, %v940
        %v1204 = vpop.permute.xlu0 %1203
        %1206 = vset.pattern.permute.xlu0 2
        %1207 = vperm.xlu0 %1206, %v941
        %v1208 = vpop.permute.xlu0 %1207
        %v1210 = vmul.f32 %v1200, %v1204
        %v1211 = vmul.f32 %v1201, %v1208
        %v1212 = vsel %vm519, %v1210, 0.0
        %v1213 = vsel %vm519, %v1211, 0.0
        %v1214 = vadd.f32 %v1212, %v1213
        %v1215 = vrot.slane %v1214, 4
        %v1216 = vadd.f32 %v1214, %v1215
        %v1217 = vrot.slane %v1216, 2
        %v1218 = vadd.f32 %v1216, %v1217
        %v1219 = vrot.slane %v1218, 1
        %v1220 = vadd.f32 %v1218, %v1219
        %v1221 = vmul.f32 %v993, %v1200
        %v1222 = vmul.f32 %v995, %v1201
        %v1223 = vadd.f32 %v1221, %v1092
        %v1224 = vadd.f32 %v1222, %v1093
        %1225 = vset.pattern.permute.xlu0 3
        %1226 = vperm.xlu0 %1225, %v940
        %v1227 = vpop.permute.xlu0 %1226
        %1229 = vset.pattern.permute.xlu0 3
        %1230 = vperm.xlu0 %1229, %v941
        %v1231 = vpop.permute.xlu0 %1230
        %v1233 = vmul.f32 %v1223, %v1227
        %v1234 = vmul.f32 %v1224, %v1231
        %v1235 = vsel %vm519, %v1233, 0.0
        %v1236 = vsel %vm519, %v1234, 0.0
        %v1237 = vadd.f32 %v1235, %v1236
        %v1238 = vrot.slane %v1237, 4
        %v1239 = vadd.f32 %v1237, %v1238
        %v1240 = vrot.slane %v1239, 2
        %v1241 = vadd.f32 %v1239, %v1240
        %v1242 = vrot.slane %v1241, 1
        %v1243 = vadd.f32 %v1241, %v1242
        %v1244 = vmul.f32 %v1003, %v1223
        %v1245 = vmul.f32 %v1005, %v1224
        %v1246 = vadd.f32 %v1244, %v1106
        %v1247 = vadd.f32 %v1245, %v1107
        %1248 = vset.pattern.permute.xlu0 4
        %1249 = vperm.xlu0 %1248, %v940
        %v1250 = vpop.permute.xlu0 %1249
        %1252 = vset.pattern.permute.xlu0 4
        %1253 = vperm.xlu0 %1252, %v941
        %v1254 = vpop.permute.xlu0 %1253
        %v1256 = vmul.f32 %v1246, %v1250
        %v1257 = vmul.f32 %v1247, %v1254
        %v1258 = vsel %vm519, %v1256, 0.0
        %v1259 = vsel %vm519, %v1257, 0.0
        %v1260 = vadd.f32 %v1258, %v1259
        %v1261 = vrot.slane %v1260, 4
        %v1262 = vadd.f32 %v1260, %v1261
        %v1263 = vrot.slane %v1262, 2
        %v1264 = vadd.f32 %v1262, %v1263
        %v1265 = vrot.slane %v1264, 1
        %v1266 = vadd.f32 %v1264, %v1265
        %v1267 = vmul.f32 %v1013, %v1246
        %v1268 = vmul.f32 %v1015, %v1247
        %v1269 = vadd.f32 %v1267, %v1120
        %v1270 = vadd.f32 %v1268, %v1121
        %1271 = vset.pattern.permute.xlu0 5
        %1272 = vperm.xlu0 %1271, %v940
        %v1273 = vpop.permute.xlu0 %1272
        %1275 = vset.pattern.permute.xlu0 5
        %1276 = vperm.xlu0 %1275, %v941
        %v1277 = vpop.permute.xlu0 %1276
        %v1279 = vmul.f32 %v1269, %v1273
        %v1280 = vmul.f32 %v1270, %v1277
        %v1281 = vsel %vm519, %v1279, 0.0
        %v1282 = vsel %vm519, %v1280, 0.0
        %v1283 = vadd.f32 %v1281, %v1282
        %v1284 = vrot.slane %v1283, 4
        %v1285 = vadd.f32 %v1283, %v1284
        %v1286 = vrot.slane %v1285, 2
        %v1287 = vadd.f32 %v1285, %v1286
        %v1288 = vrot.slane %v1287, 1
        %v1289 = vadd.f32 %v1287, %v1288
        %v1290 = vmul.f32 %v1023, %v1269
        %v1291 = vmul.f32 %v1025, %v1270
        %v1292 = vadd.f32 %v1290, %v1134
        %v1293 = vadd.f32 %v1291, %v1135
        %1294 = vset.pattern.permute.xlu0 6
        %1295 = vperm.xlu0 %1294, %v940
        %v1296 = vpop.permute.xlu0 %1295
        %1298 = vset.pattern.permute.xlu0 6
        %1299 = vperm.xlu0 %1298, %v941
        %v1300 = vpop.permute.xlu0 %1299
        %v1302 = vmul.f32 %v1292, %v1296
        %v1303 = vmul.f32 %v1293, %v1300
        %v1304 = vsel %vm519, %v1302, 0.0
        %v1305 = vsel %vm519, %v1303, 0.0
        %v1306 = vadd.f32 %v1304, %v1305
        %v1307 = vrot.slane %v1306, 4
        %v1308 = vadd.f32 %v1306, %v1307
        %v1309 = vrot.slane %v1308, 2
        %v1310 = vadd.f32 %v1308, %v1309
        %v1311 = vrot.slane %v1310, 1
        %v1312 = vadd.f32 %v1310, %v1311
        %v1313 = vmul.f32 %v1033, %v1292
        %v1314 = vmul.f32 %v1035, %v1293
        %v1315 = vadd.f32 %v1313, %v1148
        %v1316 = vadd.f32 %v1314, %v1149
        %1317 = vset.pattern.permute.xlu0 7
        %1318 = vperm.xlu0 %1317, %v940
        %v1319 = vpop.permute.xlu0 %1318
        %1321 = vset.pattern.permute.xlu0 7
        %1322 = vperm.xlu0 %1321, %v941
        %v1323 = vpop.permute.xlu0 %1322
        %v1325 = vmul.f32 %v1315, %v1319
        %v1326 = vmul.f32 %v1316, %v1323
        %v1327 = vsel %vm519, %v1325, 0.0
        %v1328 = vsel %vm519, %v1326, 0.0
        %v1329 = vadd.f32 %v1327, %v1328
        %v1330 = vrot.slane %v1329, 4
        %v1331 = vadd.f32 %v1329, %v1330
        %v1332 = vrot.slane %v1331, 2
        %v1333 = vadd.f32 %v1331, %v1332
        %v1334 = vrot.slane %v1333, 1
        %v1335 = vadd.f32 %v1333, %v1334
        %vm1336 = vcmask 1040384
        %v1337 = vsel %vm1336, %v1174, %v1197
        %vm1338 = vcmask 1041408
        %v1339 = vsel %vm1338, %v1337, %v1220
        %v1340 = vsel %vm625, %v1339, %v1243
        %vm1341 = vcmask 1043456
        %v1342 = vsel %vm1341, %v1340, %v1266
        %vm1343 = vcmask 1044480
        %v1344 = vsel %vm1343, %v1342, %v1289
        %v1345 = vsel %vm557, %v1344, %v1312
        %v1346 = vsel %vm540, %v1345, %v1335
        %1347 = vst.msk [vmem:[#allocation5] sm:$0xff] %vm519, %v1346
        %1348 = vst.msk [vmem:[#allocation3] sm:$0xff] %vm519, %v1315
        %1349 = vst.msk [vmem:[#allocation3 + $0x8] sm:$0xff] %vm519, %v1316
        %v1350 = vld [vmem:[#allocation5] sm:$0xff]
        %v1351 = vld [vmem:[#allocation14] sm:$0x1]
        %v1353 = vlaneseq
        %v1354 = vshrl.u32 %v1353, 7
        %v1355 = vsub.s32 0, %v1354
        %v1356 = vrot.slane %v1351, %v1355
        %v1358 = vmul.f32 %v1356, %v597
        %v1359 = vmul.f32 %v1356, %v598
        %v1362 = vrot.slane %v1358, 5
        %v1363 = vrot.slane %v1359, 5
        %v1364 = vsel %vm625, %v1362, %v1363
        %v1366 = vadd.f32 %v1350, %v1364
        %v1367 = vsub.f32 0.0, %v516
        %v1368 = vmul.f32 %v1367, 1.442695
        %v1369 = vpow.pop %v1368
        %v1370 = vadd.f32 %v1369, 1.0
        %v1371 = vrcp.pop %v1370
        %v1372 = vmul.f32 1.0, %v1371
        %v1373 = vmul.f32 %v516, %v1372
        %1375 = vrot.lane.b32.xlu0 %v1373, 64
        %v1376 = vpop.permute.xlu0 %1375
        %v1378 = vmul.f32 %v1366, %v1376
        %v1379 = vld [vmem:[%s9] sm:$0xff]
        %v1380 = vld [vmem:[%s9 + $0x8] sm:$0xff]
        %v1381 = vld [vmem:[%s9 + $0x10] sm:$0xff]
        %v1382 = vld [vmem:[%s9 + $0x18] sm:$0xff]
        %v1383 = vld [vmem:[%s9 + $0x20] sm:$0xff]
        %v1384 = vld [vmem:[%s9 + $0x28] sm:$0xff]
        %v1385 = vld [vmem:[%s9 + $0x30] sm:$0xff]
        %v1386 = vld [vmem:[%s9 + $0x38] sm:$0xff]
        %v1388 = vsel %vm519, %v1378, 0
        %1390 = vmatprep.subr.mxu0 0.0
        %1391 = vmatpush1.msra.mxu0 %v1379
        %1392 = vmatprep.subr.mxu0 0.0
        %1393 = vmatpush1.msra.mxu0 %v1380
        %1394 = vmatprep.subr.mxu0 0.0
        %1395 = vmatpush1.msra.mxu0 %v1381
        %1396 = vmatprep.subr.mxu0 0.0
        %1397 = vmatpush1.msra.mxu0 %v1382
        %1398 = vmatprep.subr.mxu0 0.0
        %1399 = vmatpush1.msra.mxu0 %v1383
        %1400 = vmatprep.subr.mxu0 0.0
        %1401 = vmatpush1.msra.mxu0 %v1384
        %1402 = vmatprep.subr.mxu0 0.0
        %1403 = vmatpush1.msra.mxu0 %v1385
        %1404 = vmatprep.subr.mxu0 0.0
        %1405 = vmatpush1.msra.mxu0 %v1386
        %1406 = vmatprep.subr.mxu0 0.0
        %1407 = vmatpush1.msra.mxu0 0.0
        %1408 = vmatprep.subr.mxu0 0.0
        %1409 = vmatpush1.msra.mxu0 0.0
        %1410 = vmatprep.subr.mxu0 0.0
        %1411 = vmatpush1.msra.mxu0 0.0
        %1412 = vmatprep.subr.mxu0 0.0
        %1413 = vmatpush1.msra.mxu0 0.0
        %1414 = vmatprep.subr.mxu0 0.0
        %1415 = vmatpush1.msra.mxu0 0.0
        %1416 = vmatprep.subr.mxu0 0.0
        %1417 = vmatpush1.msra.mxu0 0.0
        %1418 = vmatprep.subr.mxu0 0.0
        %1419 = vmatpush1.msra.mxu0 0.0
        %1420 = vmatprep.subr.mxu0 0.0
        %1421 = vmatpush1.msra.mxu0 0.0
        %1422 = vmatprep.subr.mxu0 0.0
        %1423 = vmatpush1.msra.mxu0 0.0
        %1424 = vmatprep.subr.mxu0 0.0
        %1425 = vmatpush1.msra.mxu0 0.0
        %1426 = vmatprep.subr.mxu0 0.0
        %1427 = vmatpush1.msra.mxu0 0.0
        %1428 = vmatprep.subr.mxu0 0.0
        %1429 = vmatpush1.msra.mxu0 0.0
        %1430 = vmatprep.subr.mxu0 0.0
        %1431 = vmatpush1.msra.mxu0 0.0
        %1432 = vmatprep.subr.mxu0 0.0
        %1433 = vmatpush1.msra.mxu0 0.0
        %1434 = vmatprep.subr.mxu0 0.0
        %1435 = vmatpush1.msra.mxu0 0.0
        %1436 = vmatprep.subr.mxu0 0.0
        %1437 = vmatpush1.msra.mxu0 0.0
        %1438 = vmatprep.subr.mxu0 0.0
        %1439 = vmatpush1.msra.mxu0 0.0
        %1440 = vmatprep.subr.mxu0 0.0
        %1441 = vmatpush1.msra.mxu0 0.0
        %1442 = vmatprep.subr.mxu0 0.0
        %1443 = vmatpush1.msra.mxu0 0.0
        %1444 = vmatprep.subr.mxu0 0.0
        %1445 = vmatpush1.msra.mxu0 0.0
        %1446 = vmatprep.subr.mxu0 0.0
        %1447 = vmatpush1.msra.mxu0 0.0
        %1448 = vmatprep.subr.mxu0 0.0
        %1449 = vmatpush1.msra.mxu0 0.0
        %1450 = vmatprep.subr.mxu0 0.0
        %1451 = vmatpush1.msra.mxu0 0.0
        %1452 = vmatprep.subr.mxu0 0.0
        %1453 = vmatpush1.msra.mxu0 0.0
        %1454 = vmatprep.mubr.f32.mxu0 0.0
        %1455 = vmatmul.mubr.f32.gmra.mrb[0].mxu0 %v1388
        %v1456 = vpop.f32.mrb[0].mxu0
        %v1457 = vadd.f32 0.0, %v1456
        %v1458 = vpop.f32.mrb[0].mxu0
        %1459 = vdwg.mxu0
        %1460 = vst.msk [vmem:[%s431] sm:$0xff] %vm445, %v1457
        %s1461 = sand.u32 %s268, 1
        %s1462 = scalar_lea.sflag [#allocation10], %s1461
        %s1463 = sand.u32 %s268, 1
        %s1464 = smul.addr %s1463, 8
        %s1465 = scalar_lea.vmem [#allocation16], %s1464
        // Predicated region
        $region81: #{tpu_custom_call.1} parent=59 // pred_check
          %p1466 = pneg %p278
        $region82: #{tpu_custom_call.1} parent=59 // pred_check_branch
          %1468 = sbr.rel (%p1466) target = $region84
        $region83: #{tpu_custom_call.1} parent=59 // pred_region
          %s1470 = ssub.s32 128, 128
          %1471 = vsyncadd %s1462, %s1470
          %s1472 = sadd.s32 %s34, %s33
          %s1473 = smul.addr %s1472, 128
          %s1474 = scalar_lea.hbm %s10, %s1473
          %s1476 = sshll.u32 %s1465, 4
          %s1477 = int_to_ptr.vmem [resolvable:$true] %s1476
          %1479 = dma.vmem_to_hbm [thread:$0]  %s1477, 128, %s1474, %s1462
        $region84: #{tpu_custom_call.1} parent=59 // pred_fallthru
          _
      $region60: #{tpu_custom_call.1} parent=5 // pred_fallthru
        _
      %p1480 = scmp.le.s32.totalorder 2, %s24
      // Predicated region
      $region85: #{tpu_custom_call.1} parent=5 // pred_check
        %p1481 = pneg %p1480
      $region86: #{tpu_custom_call.1} parent=5 // pred_check_branch
        %1483 = sbr.rel (%p1481) target = $region88
      $region87: #{tpu_custom_call.1} parent=5 // pred_region
        %s1484 = ssub.s32 %s24, 2
        // Predicated region
        $region89: #{tpu_custom_call.1} parent=87 // pred_check
          %p1485 = pneg %p284
        $region90: #{tpu_custom_call.1} parent=87 // pred_check_branch
          %1487 = sbr.rel (%p1485) target = $region92
        $region91: #{tpu_custom_call.1} parent=87 // pred_region
          %s1488 = sand.u32 %s269, 1
          %s1489 = scalar_lea.sflag [#allocation10], %s1488
          %s1490 = sand.u32 %s269, 1
          %s1491 = smul.addr %s1490, 8
          %s1492 = scalar_lea.vmem [#allocation16], %s1491
          %1493 = dma.done %s1489, 128
        $region92: #{tpu_custom_call.1} parent=87 // pred_fallthru
          _
      $region88: #{tpu_custom_call.1} parent=5 // pred_fallthru
        _
    $region6: #{tpu_custom_call.1} parent=1 // loop_footer
      %s28 = sadd.s32 1, %s24
    $region7: #{tpu_custom_call.1} parent=1 // loop_footer_branch
      %23 = sbr.rel target = $region3
    $region8: #{tpu_custom_call.1} parent=1 // loop_exit
      _
    %1494 = vsyncpa [#allocation9], 1
    %s1495 = scalar_lea.sflag [#allocation9], 1
    %1496 = vsyncpa %s1495, 1
    %1497 = vsyncpa [#allocation12], 1
    %1498 = vsyncpa [#allocation15], 1
    %1499 = vsyncpa [#allocation10], 1
    %s1500 = scalar_lea.sflag [#allocation10], 1
    %1501 = vsyncpa %s1500, 1

</llo_original>
